<compile_context>
chip_gen: v7x
topology: tpu7x:2x2x1
jax: 0.10.0
libtpu: 0.0.40
codegen_flags: <defaults>
</compile_context>

<pallas_src>
import numpy as np
import jax
import jax.numpy as jnp
from jax.experimental import pallas as pl
from jax.experimental.pallas import tpu as pltpu

N_NODES = 6     # graph nodes
NFEAT = 16      # gc1 input features
NHID = 32       # gc1 output / gc2 input
NOUT = 16       # gc2 output; N_NODES * NOUT == 96 == MLP input dim
CHUNK = 16      # node-chunk width of the packed slabs (== NFEAT == NOUT)
PACK = N_NODES * CHUNK          # 96
MLP_H1 = 64
MLP_H2 = 16
MLP_OUT = 2

assert NFEAT == CHUNK and NOUT == CHUNK


def _round_up(v, m):
    return ((v + m - 1) // m) * m


def camv_gcn_kernel(x_ref, adj_ref, r_ref, w1_ref, b1_ref, w2_ref, b2_ref,
                    wm1_ref, bm1_ref, wm2_ref, bm2_ref, wm3_ref, bm3_ref,
                    out_ref):
    f32 = jnp.float32
    x = x_ref[...].astype(f32)        # (BG, 96)  lane-packed node features
    adj = adj_ref[...]                # (BG, 36)  adj[b, n*6 + m], f32
    w1bd = w1_ref[...]                # (96, 192) block-diagonal W1
    w2bd = w2_ref[...]                # (192, 96) block-diagonal W2
    cdt = w1bd.dtype                  # MXU-input dtype (f32 or bf16)

    def c(a):                         # cast MXU inputs only when needed (no-op in f32)
        return a if a.dtype == cdt else a.astype(cdt)

    # Lane-replicated adjacency coefficients, built ONCE per step on the MXU:
    #   coef[:, d*128 + n*16 + j] = adj[b, n, (n + d) % 6]
    coef = jnp.dot(adj, r_ref[...], preferred_element_type=f32)   # (BG, 768)

    def contract(s):
        # (adj @ s) on a lane-packed slab (chunks of 16 lanes per node):
        # diagonal-d formulation -> 6 fused multiply-accumulate passes.
        acc = coef[:, 0:PACK] * s
        for d in range(1, N_NODES):
            k = d * CHUNK
            rolled = jnp.concatenate([s[:, k:], s[:, :k]], axis=1)  # roll by -k lanes
            acc = acc + coef[:, d * 128:d * 128 + PACK] * rolled
        return acc

    # --- gc1: relu(adj @ (x @ W1) + b1) == relu((adj @ x) @ W1bd + b1) ---
    y1 = contract(x)                                                 # (BG, 96)
    h1 = jnp.maximum(
        jnp.dot(c(y1), w1bd, preferred_element_type=f32) + b1_ref[...], 0.0)  # (BG,192)
    # F.dropout with inference semantics -> identity.

    # --- gc2: adj @ (h1 @ W2) + b2 ---
    s2 = jnp.dot(c(h1), w2bd, preferred_element_type=f32)            # (BG, 96)
    h2 = contract(s2) + b2_ref[...]                                  # (BG, 96)

    # --- MLP head on the already-flattened (node-major) packed slab ---
    m1 = jnp.maximum(
        jnp.dot(c(h2), wm1_ref[...], preferred_element_type=f32) + bm1_ref[...], 0.0)
    m2 = jnp.maximum(
        jnp.dot(c(m1), wm2_ref[...], preferred_element_type=f32) + bm2_ref[...], 0.0)
    z = jnp.dot(c(m2), wm3_ref[...], preferred_element_type=f32) + bm3_ref[...]
    out_ref[...] = z.astype(out_ref.dtype)                           # (BG, 2)


def camv_gcn_forward(x, adj, params, *, block_graphs=1024, compute_dtype=jnp.float32):
    B = x.shape[0]
    w1, b1, w2, b2, wm1, bm1, wm2, bm2, wm3, bm3 = params

    # ---- layout plumbing in plain JAX (outside the kernel) ----
    x_packed = x.reshape(B, PACK).astype(compute_dtype)               # (B, 96)
    adj_flat = adj.reshape(B, N_NODES * N_NODES).astype(jnp.float32)  # (B, 36)

    # Constant 0/1 replication matrix: adj_flat @ R -> lane-replicated coefficients,
    # with each diagonal-d block 128-lane aligned (lanes d*128 .. d*128+95 used).
    r_np = np.zeros((N_NODES * N_NODES, N_NODES * 128), np.float32)
    for d in range(N_NODES):
        for n in range(N_NODES):
            m = (n + d) % N_NODES
            r_np[n * N_NODES + m, d * 128 + n * CHUNK: d * 128 + (n + 1) * CHUNK] = 1.0
    r = jnp.asarray(r_np)

    # Block-diagonal shared weights -> one matmul per GCN layer on the packed slab.
    eye = jnp.eye(N_NODES, dtype=jnp.float32)
    w1bd = jnp.kron(eye, w1)                      # (96, 192)
    w2bd = jnp.kron(eye, w2)                      # (192, 96)
    b1t = jnp.tile(b1, N_NODES).reshape(1, -1)    # (1, 192)
    b2t = jnp.tile(b2, N_NODES).reshape(1, -1)    # (1, 96)

    # ---- grid: BG graphs per step, >= 2 steps when B > 8 (v7x megacore) ----
    target = max(8, pl.cdiv(B, 2))
    BG = _round_up(min(block_graphs, target), 8)
    B_pad = _round_up(B, BG)
    grid = (B_pad // BG,)
    if B_pad != B:
        x_packed = jnp.pad(x_packed, ((0, B_pad - B), (0, 0)))
        adj_flat = jnp.pad(adj_flat, ((0, B_pad - B), (0, 0)))

    # Advisory cost estimate for XLA scheduling around the custom call.
    flops_per_graph = 2 * (36 * 768 + 96 * 192 + 192 * 96 + 96 * 64 + 64 * 16 + 16 * 2) \
        + 2 * 2 * N_NODES * PACK
    weight_bytes = 4 * sum(int(a.size) for a in
                           (r, w1bd, w2bd, b1t, b2t, wm1, bm1, wm2, bm2, wm3, bm3))
    cost = pl.CostEstimate(
        flops=int(B_pad) * int(flops_per_graph),
        transcendentals=0,
        bytes_accessed=int(B_pad) * (PACK + 36 + MLP_OUT) * 4 + weight_bytes)

    def full_spec(shape):
        return pl.BlockSpec(shape, lambda i: (0, 0))

    out = pl.pallas_call(
        camv_gcn_kernel,
        out_shape=jax.ShapeDtypeStruct((B_pad, MLP_OUT), jnp.float32),
        grid=grid,
        in_specs=[
            pl.BlockSpec((BG, PACK), lambda i: (i, 0)),
            pl.BlockSpec((BG, N_NODES * N_NODES), lambda i: (i, 0)),
            full_spec((N_NODES * N_NODES, N_NODES * 128)),
            full_spec((PACK, N_NODES * NHID)),
            full_spec((1, N_NODES * NHID)),
            full_spec((N_NODES * NHID, PACK)),
            full_spec((1, PACK)),
            full_spec((PACK, MLP_H1)),
            full_spec((1, MLP_H1)),
            full_spec((MLP_H1, MLP_H2)),
            full_spec((1, MLP_H2)),
            full_spec((MLP_H2, MLP_OUT)),
            full_spec((1, MLP_OUT)),
        ],
        out_specs=pl.BlockSpec((BG, MLP_OUT), lambda i: (i, 0)),
        compiler_params=pltpu.CompilerParams(
            dimension_semantics=("parallel",),
            vmem_limit_bytes=32 * 1024 * 1024),
        cost_estimate=cost,
    )(x_packed, adj_flat, r,
      w1bd.astype(compute_dtype), b1t.astype(jnp.float32),
      w2bd.astype(compute_dtype), b2t.astype(jnp.float32),
      wm1.astype(compute_dtype), bm1.reshape(1, -1).astype(jnp.float32),
      wm2.astype(compute_dtype), bm2.reshape(1, -1).astype(jnp.float32),
      wm3.astype(compute_dtype), bm3.reshape(1, -1).astype(jnp.float32))
    return out[:B]   # drop batch padding -> (B, 2)


def reference_forward(x, adj, params):
    w1, b1, w2, b2, wm1, bm1, wm2, bm2, wm3, bm3 = params
    h1 = jax.nn.relu(jnp.einsum('bnm,bmf->bnf', adj, x @ w1) + b1)
    h2 = jnp.einsum('bnm,bmf->bnf', adj, h1 @ w2) + b2
    flat = h2.reshape(x.shape[0], -1)
    m1 = jax.nn.relu(flat @ wm1 + bm1)
    m2 = jax.nn.relu(m1 @ wm2 + bm2)
    return m2 @ wm3 + bm3


def init_params(key):
    ks = jax.random.split(key, 10)

    def w(k, shape, scale=0.1):
        return (scale * jax.random.normal(k, shape)).astype(jnp.float32)

    w1 = w(ks[0], (NFEAT, NHID));        b1 = w(ks[1], (NHID,))
    w2 = w(ks[2], (NHID, NOUT));         b2 = w(ks[3], (NOUT,))
    wm1 = w(ks[4], (N_NODES * NOUT, MLP_H1)); bm1 = w(ks[5], (MLP_H1,))
    wm2 = w(ks[6], (MLP_H1, MLP_H2));    bm2 = w(ks[7], (MLP_H2,))
    wm3 = w(ks[8], (MLP_H2, MLP_OUT));   bm3 = w(ks[9], (MLP_OUT,))
    return (w1, b1, w2, b2, wm1, bm1, wm2, bm2, wm3, bm3)


if __name__ == "__main__":
    key = jax.random.PRNGKey(0)
    kx, ka, kp = jax.random.split(key, 3)

    B = 10   # small; not a multiple of 8 -> exercises batch padding and a 2-step grid
    x = (0.5 * jax.random.normal(kx, (B, N_NODES, NFEAT))).astype(jnp.float32)
    adj = jax.nn.softmax(jax.random.normal(ka, (B, N_NODES, N_NODES)), axis=-1)
    adj = adj.astype(jnp.float32)
    params = init_params(kp)

    z = camv_gcn_forward(x, adj, params)
    z = jax.block_until_ready(z)

    z_ref = reference_forward(x, adj, params)
    assert z.shape == (B, MLP_OUT)
    assert jnp.allclose(z, z_ref, atol=1e-4, rtol=1e-4), (z, z_ref)
    print("KERNEL_OK")
</pallas_src>

<mosaic_0001>
module attributes {stable_mosaic.version = 11 : i64} {
  func.func @camv_gcn_kernel(%arg0: i32, %arg1: memref<8x96xf32, #tpu.memory_space<vmem>>, %arg2: memref<8x36xf32, #tpu.memory_space<vmem>>, %arg3: memref<36x768xf32, #tpu.memory_space<vmem>>, %arg4: memref<96x192xf32, #tpu.memory_space<vmem>>, %arg5: memref<1x192xf32, #tpu.memory_space<vmem>>, %arg6: memref<192x96xf32, #tpu.memory_space<vmem>>, %arg7: memref<1x96xf32, #tpu.memory_space<vmem>>, %arg8: memref<96x64xf32, #tpu.memory_space<vmem>>, %arg9: memref<1x64xf32, #tpu.memory_space<vmem>>, %arg10: memref<64x16xf32, #tpu.memory_space<vmem>>, %arg11: memref<1x16xf32, #tpu.memory_space<vmem>>, %arg12: memref<16x2xf32, #tpu.memory_space<vmem>>, %arg13: memref<1x2xf32, #tpu.memory_space<vmem>>, %arg14: memref<8x2xf32, #tpu.memory_space<vmem>>) attributes {dimension_semantics = [#tpu.dimension_semantics<parallel>], iteration_bounds = array<i64: 2>, scalar_prefetch = 0 : i64, scratch_operands = 0 : i64, tpu.core_type = #tpu.core_type<tc>, window_params = [{transform_indices = @transform_0, window_bounds = array<i64: 8, 96>}, {transform_indices = @transform_1, window_bounds = array<i64: 8, 36>}, {pipeline_mode = #tpu.pipeline_mode<synchronous>, transform_indices = @transform_2, window_bounds = array<i64: 36, 768>}, {pipeline_mode = #tpu.pipeline_mode<synchronous>, transform_indices = @transform_3, window_bounds = array<i64: 96, 192>}, {pipeline_mode = #tpu.pipeline_mode<synchronous>, transform_indices = @transform_4, window_bounds = array<i64: 1, 192>}, {pipeline_mode = #tpu.pipeline_mode<synchronous>, transform_indices = @transform_5, window_bounds = array<i64: 192, 96>}, {pipeline_mode = #tpu.pipeline_mode<synchronous>, transform_indices = @transform_6, window_bounds = array<i64: 1, 96>}, {pipeline_mode = #tpu.pipeline_mode<synchronous>, transform_indices = @transform_7, window_bounds = array<i64: 96, 64>}, {pipeline_mode = #tpu.pipeline_mode<synchronous>, transform_indices = @transform_8, window_bounds = array<i64: 1, 64>}, {pipeline_mode = #tpu.pipeline_mode<synchronous>, transform_indices = @transform_9, window_bounds = array<i64: 64, 16>}, {pipeline_mode = #tpu.pipeline_mode<synchronous>, transform_indices = @transform_10, window_bounds = array<i64: 1, 16>}, {pipeline_mode = #tpu.pipeline_mode<synchronous>, transform_indices = @transform_11, window_bounds = array<i64: 16, 2>}, {pipeline_mode = #tpu.pipeline_mode<synchronous>, transform_indices = @transform_12, window_bounds = array<i64: 1, 2>}, {transform_indices = @transform_13, window_bounds = array<i64: 8, 2>}]} {
    %c0 = arith.constant 0 : index
    %c0_0 = arith.constant 0 : index
    %0 = vector.load %arg1[%c0, %c0_0] : memref<8x96xf32, #tpu.memory_space<vmem>>, vector<8x96xf32>
    %c0_1 = arith.constant 0 : index
    %c0_2 = arith.constant 0 : index
    %1 = vector.load %arg2[%c0_1, %c0_2] : memref<8x36xf32, #tpu.memory_space<vmem>>, vector<8x36xf32>
    %c0_3 = arith.constant 0 : index
    %c0_4 = arith.constant 0 : index
    %2 = vector.load %arg4[%c0_3, %c0_4] : memref<96x192xf32, #tpu.memory_space<vmem>>, vector<96x192xf32>
    %c0_5 = arith.constant 0 : index
    %c0_6 = arith.constant 0 : index
    %3 = vector.load %arg6[%c0_5, %c0_6] : memref<192x96xf32, #tpu.memory_space<vmem>>, vector<192x96xf32>
    %c0_7 = arith.constant 0 : index
    %c0_8 = arith.constant 0 : index
    %4 = vector.load %arg3[%c0_7, %c0_8] : memref<36x768xf32, #tpu.memory_space<vmem>>, vector<36x768xf32>
    %cst = arith.constant dense<0.000000e+00> : vector<8x768xf32>
    %5 = tpu.matmul %1, %4, %cst {dimension_numbers = #tpu.dot_dimension_numbers<[1], [0], [0], [1], [0, 0, 1, 1], [], []>} : vector<8x36xf32>, vector<36x768xf32>, vector<8x768xf32> -> vector<8x768xf32>
    %6 = vector.extract_strided_slice %5 {offsets = [0, 0], sizes = [8, 96], strides = [1, 1]} : vector<8x768xf32> to vector<8x96xf32>
    %7 = arith.mulf %6, %0 : vector<8x96xf32>
    %8 = vector.extract_strided_slice %0 {offsets = [0, 16], sizes = [8, 80], strides = [1, 1]} : vector<8x96xf32> to vector<8x80xf32>
    %9 = vector.extract_strided_slice %0 {offsets = [0, 0], sizes = [8, 16], strides = [1, 1]} : vector<8x96xf32> to vector<8x16xf32>
    %10 = tpu.concatenate %8, %9 in 1 : vector<8x80xf32>, vector<8x16xf32> -> vector<8x96xf32>
    %11 = vector.extract_strided_slice %5 {offsets = [0, 128], sizes = [8, 96], strides = [1, 1]} : vector<8x768xf32> to vector<8x96xf32>
    %12 = arith.mulf %11, %10 : vector<8x96xf32>
    %13 = arith.addf %7, %12 : vector<8x96xf32>
    %14 = vector.extract_strided_slice %0 {offsets = [0, 32], sizes = [8, 64], strides = [1, 1]} : vector<8x96xf32> to vector<8x64xf32>
    %15 = vector.extract_strided_slice %0 {offsets = [0, 0], sizes = [8, 32], strides = [1, 1]} : vector<8x96xf32> to vector<8x32xf32>
    %16 = tpu.concatenate %14, %15 in 1 : vector<8x64xf32>, vector<8x32xf32> -> vector<8x96xf32>
    %17 = vector.extract_strided_slice %5 {offsets = [0, 256], sizes = [8, 96], strides = [1, 1]} : vector<8x768xf32> to vector<8x96xf32>
    %18 = arith.mulf %17, %16 : vector<8x96xf32>
    %19 = arith.addf %13, %18 : vector<8x96xf32>
    %20 = vector.extract_strided_slice %0 {offsets = [0, 48], sizes = [8, 48], strides = [1, 1]} : vector<8x96xf32> to vector<8x48xf32>
    %21 = vector.extract_strided_slice %0 {offsets = [0, 0], sizes = [8, 48], strides = [1, 1]} : vector<8x96xf32> to vector<8x48xf32>
    %22 = tpu.concatenate %20, %21 in 1 : vector<8x48xf32>, vector<8x48xf32> -> vector<8x96xf32>
    %23 = vector.extract_strided_slice %5 {offsets = [0, 384], sizes = [8, 96], strides = [1, 1]} : vector<8x768xf32> to vector<8x96xf32>
    %24 = arith.mulf %23, %22 : vector<8x96xf32>
    %25 = arith.addf %19, %24 : vector<8x96xf32>
    %26 = vector.extract_strided_slice %0 {offsets = [0, 64], sizes = [8, 32], strides = [1, 1]} : vector<8x96xf32> to vector<8x32xf32>
    %27 = vector.extract_strided_slice %0 {offsets = [0, 0], sizes = [8, 64], strides = [1, 1]} : vector<8x96xf32> to vector<8x64xf32>
    %28 = tpu.concatenate %26, %27 in 1 : vector<8x32xf32>, vector<8x64xf32> -> vector<8x96xf32>
    %29 = vector.extract_strided_slice %5 {offsets = [0, 512], sizes = [8, 96], strides = [1, 1]} : vector<8x768xf32> to vector<8x96xf32>
    %30 = arith.mulf %29, %28 : vector<8x96xf32>
    %31 = arith.addf %25, %30 : vector<8x96xf32>
    %32 = vector.extract_strided_slice %0 {offsets = [0, 80], sizes = [8, 16], strides = [1, 1]} : vector<8x96xf32> to vector<8x16xf32>
    %33 = vector.extract_strided_slice %0 {offsets = [0, 0], sizes = [8, 80], strides = [1, 1]} : vector<8x96xf32> to vector<8x80xf32>
    %34 = tpu.concatenate %32, %33 in 1 : vector<8x16xf32>, vector<8x80xf32> -> vector<8x96xf32>
    %35 = vector.extract_strided_slice %5 {offsets = [0, 640], sizes = [8, 96], strides = [1, 1]} : vector<8x768xf32> to vector<8x96xf32>
    %36 = arith.mulf %35, %34 : vector<8x96xf32>
    %37 = arith.addf %31, %36 : vector<8x96xf32>
    %cst_9 = arith.constant dense<0.000000e+00> : vector<8x192xf32>
    %38 = tpu.matmul %37, %2, %cst_9 {dimension_numbers = #tpu.dot_dimension_numbers<[1], [0], [0], [1], [0, 0, 1, 1], [], []>} : vector<8x96xf32>, vector<96x192xf32>, vector<8x192xf32> -> vector<8x192xf32>
    %c0_10 = arith.constant 0 : index
    %c0_11 = arith.constant 0 : index
    %39 = vector.load %arg5[%c0_10, %c0_11] : memref<1x192xf32, #tpu.memory_space<vmem>>, vector<1x192xf32>
    %40 = vector.broadcast %39 : vector<1x192xf32> to vector<8x192xf32>
    %41 = arith.addf %38, %40 : vector<8x192xf32>
    %cst_12 = arith.constant 0.000000e+00 : f32
    %42 = vector.broadcast %cst_12 : f32 to vector<8x192xf32>
    %43 = arith.maximumf %41, %42 : vector<8x192xf32>
    %cst_13 = arith.constant dense<0.000000e+00> : vector<8x96xf32>
    %44 = tpu.matmul %43, %3, %cst_13 {dimension_numbers = #tpu.dot_dimension_numbers<[1], [0], [0], [1], [0, 0, 1, 1], [], []>} : vector<8x192xf32>, vector<192x96xf32>, vector<8x96xf32> -> vector<8x96xf32>
    %45 = vector.extract_strided_slice %5 {offsets = [0, 0], sizes = [8, 96], strides = [1, 1]} : vector<8x768xf32> to vector<8x96xf32>
    %46 = arith.mulf %45, %44 : vector<8x96xf32>
    %47 = vector.extract_strided_slice %44 {offsets = [0, 16], sizes = [8, 80], strides = [1, 1]} : vector<8x96xf32> to vector<8x80xf32>
    %48 = vector.extract_strided_slice %44 {offsets = [0, 0], sizes = [8, 16], strides = [1, 1]} : vector<8x96xf32> to vector<8x16xf32>
    %49 = tpu.concatenate %47, %48 in 1 : vector<8x80xf32>, vector<8x16xf32> -> vector<8x96xf32>
    %50 = vector.extract_strided_slice %5 {offsets = [0, 128], sizes = [8, 96], strides = [1, 1]} : vector<8x768xf32> to vector<8x96xf32>
    %51 = arith.mulf %50, %49 : vector<8x96xf32>
    %52 = arith.addf %46, %51 : vector<8x96xf32>
    %53 = vector.extract_strided_slice %44 {offsets = [0, 32], sizes = [8, 64], strides = [1, 1]} : vector<8x96xf32> to vector<8x64xf32>
    %54 = vector.extract_strided_slice %44 {offsets = [0, 0], sizes = [8, 32], strides = [1, 1]} : vector<8x96xf32> to vector<8x32xf32>
    %55 = tpu.concatenate %53, %54 in 1 : vector<8x64xf32>, vector<8x32xf32> -> vector<8x96xf32>
    %56 = vector.extract_strided_slice %5 {offsets = [0, 256], sizes = [8, 96], strides = [1, 1]} : vector<8x768xf32> to vector<8x96xf32>
    %57 = arith.mulf %56, %55 : vector<8x96xf32>
    %58 = arith.addf %52, %57 : vector<8x96xf32>
    %59 = vector.extract_strided_slice %44 {offsets = [0, 48], sizes = [8, 48], strides = [1, 1]} : vector<8x96xf32> to vector<8x48xf32>
    %60 = vector.extract_strided_slice %44 {offsets = [0, 0], sizes = [8, 48], strides = [1, 1]} : vector<8x96xf32> to vector<8x48xf32>
    %61 = tpu.concatenate %59, %60 in 1 : vector<8x48xf32>, vector<8x48xf32> -> vector<8x96xf32>
    %62 = vector.extract_strided_slice %5 {offsets = [0, 384], sizes = [8, 96], strides = [1, 1]} : vector<8x768xf32> to vector<8x96xf32>
    %63 = arith.mulf %62, %61 : vector<8x96xf32>
    %64 = arith.addf %58, %63 : vector<8x96xf32>
    %65 = vector.extract_strided_slice %44 {offsets = [0, 64], sizes = [8, 32], strides = [1, 1]} : vector<8x96xf32> to vector<8x32xf32>
    %66 = vector.extract_strided_slice %44 {offsets = [0, 0], sizes = [8, 64], strides = [1, 1]} : vector<8x96xf32> to vector<8x64xf32>
    %67 = tpu.concatenate %65, %66 in 1 : vector<8x32xf32>, vector<8x64xf32> -> vector<8x96xf32>
    %68 = vector.extract_strided_slice %5 {offsets = [0, 512], sizes = [8, 96], strides = [1, 1]} : vector<8x768xf32> to vector<8x96xf32>
    %69 = arith.mulf %68, %67 : vector<8x96xf32>
    %70 = arith.addf %64, %69 : vector<8x96xf32>
    %71 = vector.extract_strided_slice %44 {offsets = [0, 80], sizes = [8, 16], strides = [1, 1]} : vector<8x96xf32> to vector<8x16xf32>
    %72 = vector.extract_strided_slice %44 {offsets = [0, 0], sizes = [8, 80], strides = [1, 1]} : vector<8x96xf32> to vector<8x80xf32>
    %73 = tpu.concatenate %71, %72 in 1 : vector<8x16xf32>, vector<8x80xf32> -> vector<8x96xf32>
    %74 = vector.extract_strided_slice %5 {offsets = [0, 640], sizes = [8, 96], strides = [1, 1]} : vector<8x768xf32> to vector<8x96xf32>
    %75 = arith.mulf %74, %73 : vector<8x96xf32>
    %76 = arith.addf %70, %75 : vector<8x96xf32>
    %c0_14 = arith.constant 0 : index
    %c0_15 = arith.constant 0 : index
    %77 = vector.load %arg7[%c0_14, %c0_15] : memref<1x96xf32, #tpu.memory_space<vmem>>, vector<1x96xf32>
    %78 = vector.broadcast %77 : vector<1x96xf32> to vector<8x96xf32>
    %79 = arith.addf %76, %78 : vector<8x96xf32>
    %c0_16 = arith.constant 0 : index
    %c0_17 = arith.constant 0 : index
    %80 = vector.load %arg8[%c0_16, %c0_17] : memref<96x64xf32, #tpu.memory_space<vmem>>, vector<96x64xf32>
    %cst_18 = arith.constant dense<0.000000e+00> : vector<8x64xf32>
    %81 = tpu.matmul %79, %80, %cst_18 {dimension_numbers = #tpu.dot_dimension_numbers<[1], [0], [0], [1], [0, 0, 1, 1], [], []>} : vector<8x96xf32>, vector<96x64xf32>, vector<8x64xf32> -> vector<8x64xf32>
    %c0_19 = arith.constant 0 : index
    %c0_20 = arith.constant 0 : index
    %82 = vector.load %arg9[%c0_19, %c0_20] : memref<1x64xf32, #tpu.memory_space<vmem>>, vector<1x64xf32>
    %83 = vector.broadcast %82 : vector<1x64xf32> to vector<8x64xf32>
    %84 = arith.addf %81, %83 : vector<8x64xf32>
    %cst_21 = arith.constant 0.000000e+00 : f32
    %85 = vector.broadcast %cst_21 : f32 to vector<8x64xf32>
    %86 = arith.maximumf %84, %85 : vector<8x64xf32>
    %c0_22 = arith.constant 0 : index
    %c0_23 = arith.constant 0 : index
    %87 = vector.load %arg10[%c0_22, %c0_23] : memref<64x16xf32, #tpu.memory_space<vmem>>, vector<64x16xf32>
    %cst_24 = arith.constant dense<0.000000e+00> : vector<8x16xf32>
    %88 = tpu.matmul %86, %87, %cst_24 {dimension_numbers = #tpu.dot_dimension_numbers<[1], [0], [0], [1], [0, 0, 1, 1], [], []>} : vector<8x64xf32>, vector<64x16xf32>, vector<8x16xf32> -> vector<8x16xf32>
    %c0_25 = arith.constant 0 : index
    %c0_26 = arith.constant 0 : index
    %89 = vector.load %arg11[%c0_25, %c0_26] : memref<1x16xf32, #tpu.memory_space<vmem>>, vector<1x16xf32>
    %90 = vector.broadcast %89 : vector<1x16xf32> to vector<8x16xf32>
    %91 = arith.addf %88, %90 : vector<8x16xf32>
    %cst_27 = arith.constant 0.000000e+00 : f32
    %92 = vector.broadcast %cst_27 : f32 to vector<8x16xf32>
    %93 = arith.maximumf %91, %92 : vector<8x16xf32>
    %c0_28 = arith.constant 0 : index
    %c0_29 = arith.constant 0 : index
    %94 = vector.load %arg12[%c0_28, %c0_29] : memref<16x2xf32, #tpu.memory_space<vmem>>, vector<16x2xf32>
    %cst_30 = arith.constant dense<0.000000e+00> : vector<8x2xf32>
    %95 = tpu.matmul %93, %94, %cst_30 {dimension_numbers = #tpu.dot_dimension_numbers<[1], [0], [0], [1], [0, 0, 1, 1], [], []>} : vector<8x16xf32>, vector<16x2xf32>, vector<8x2xf32> -> vector<8x2xf32>
    %c0_31 = arith.constant 0 : index
    %c0_32 = arith.constant 0 : index
    %96 = vector.load %arg13[%c0_31, %c0_32] : memref<1x2xf32, #tpu.memory_space<vmem>>, vector<1x2xf32>
    %97 = vector.broadcast %96 : vector<1x2xf32> to vector<8x2xf32>
    %98 = arith.addf %95, %97 : vector<8x2xf32>
    %c0_33 = arith.constant 0 : index
    %c0_34 = arith.constant 0 : index
    %99 = vector.load %arg14[%c0_33, %c0_34] : memref<8x2xf32, #tpu.memory_space<vmem>>, vector<8x2xf32>
    tpu.vector_store %arg14[%c0_33, %c0_34], %98 {strides = array<i32>} : memref<8x2xf32, #tpu.memory_space<vmem>>, vector<8x2xf32>,
    return
  }
  func.func @transform_0(%arg0: i32) -> (i32, i32) {
    %c0_i32 = arith.constant 0 : i32
    %c0_i32_0 = arith.constant 0 : i32
    return %arg0, %c0_i32 : i32, i32
  }
  func.func @transform_1(%arg0: i32) -> (i32, i32) {
    %c0_i32 = arith.constant 0 : i32
    %c0_i32_0 = arith.constant 0 : i32
    return %arg0, %c0_i32 : i32, i32
  }
  func.func @transform_2(%arg0: i32) -> (i32, i32) {
    %c0_i32 = arith.constant 0 : i32
    %c0_i32_0 = arith.constant 0 : i32
    %c0_i32_1 = arith.constant 0 : i32
    return %c0_i32, %c0_i32_0 : i32, i32
  }
  func.func @transform_3(%arg0: i32) -> (i32, i32) {
    %c0_i32 = arith.constant 0 : i32
    %c0_i32_0 = arith.constant 0 : i32
    %c0_i32_1 = arith.constant 0 : i32
    return %c0_i32, %c0_i32_0 : i32, i32
  }
  func.func @transform_4(%arg0: i32) -> (i32, i32) {
    %c0_i32 = arith.constant 0 : i32
    %c0_i32_0 = arith.constant 0 : i32
    %c0_i32_1 = arith.constant 0 : i32
    return %c0_i32, %c0_i32_0 : i32, i32
  }
  func.func @transform_5(%arg0: i32) -> (i32, i32) {
    %c0_i32 = arith.constant 0 : i32
    %c0_i32_0 = arith.constant 0 : i32
    %c0_i32_1 = arith.constant 0 : i32
    return %c0_i32, %c0_i32_0 : i32, i32
  }
  func.func @transform_6(%arg0: i32) -> (i32, i32) {
    %c0_i32 = arith.constant 0 : i32
    %c0_i32_0 = arith.constant 0 : i32
    %c0_i32_1 = arith.constant 0 : i32
    return %c0_i32, %c0_i32_0 : i32, i32
  }
  func.func @transform_7(%arg0: i32) -> (i32, i32) {
    %c0_i32 = arith.constant 0 : i32
    %c0_i32_0 = arith.constant 0 : i32
    %c0_i32_1 = arith.constant 0 : i32
    return %c0_i32, %c0_i32_0 : i32, i32
  }
  func.func @transform_8(%arg0: i32) -> (i32, i32) {
    %c0_i32 = arith.constant 0 : i32
    %c0_i32_0 = arith.constant 0 : i32
    %c0_i32_1 = arith.constant 0 : i32
    return %c0_i32, %c0_i32_0 : i32, i32
  }
  func.func @transform_9(%arg0: i32) -> (i32, i32) {
    %c0_i32 = arith.constant 0 : i32
    %c0_i32_0 = arith.constant 0 : i32
    %c0_i32_1 = arith.constant 0 : i32
    return %c0_i32, %c0_i32_0 : i32, i32
  }
  func.func @transform_10(%arg0: i32) -> (i32, i32) {
    %c0_i32 = arith.constant 0 : i32
    %c0_i32_0 = arith.constant 0 : i32
    %c0_i32_1 = arith.constant 0 : i32
    return %c0_i32, %c0_i32_0 : i32, i32
  }
  func.func @transform_11(%arg0: i32) -> (i32, i32) {
    %c0_i32 = arith.constant 0 : i32
    %c0_i32_0 = arith.constant 0 : i32
    %c0_i32_1 = arith.constant 0 : i32
    return %c0_i32, %c0_i32_0 : i32, i32
  }
  func.func @transform_12(%arg0: i32) -> (i32, i32) {
    %c0_i32 = arith.constant 0 : i32
    %c0_i32_0 = arith.constant 0 : i32
    %c0_i32_1 = arith.constant 0 : i32
    return %c0_i32, %c0_i32_0 : i32, i32
  }
  func.func @transform_13(%arg0: i32) -> (i32, i32) {
    %c0_i32 = arith.constant 0 : i32
    %c0_i32_0 = arith.constant 0 : i32
    return %arg0, %c0_i32 : i32, i32
  }
}

</mosaic_0001>

<llo_original>
// kernel: tpu_custom_call.1
$region0: #{tpu_custom_call.1}
  #allocation0 [shape = 'u32[]', space=smem, size = 0x4, offset = 0x4, fixed_abs, tag = 'smem constant byte address 0x4 - core index']
  #allocation1 [shape = 'u32[144,128]{1,0:T(1,128)}', space=vmem, size = 0x12000, scoped, tag = 'internal scratch']
  %s0 = inlined_call_operand.vmem [shape: f32[16,96], index: 0, kind: input, shape index: {}]
  %s1 = inlined_call_operand.hbm [shape: f32[16,36], index: 1, kind: input, shape index: {}]
  %s2 = inlined_call_operand.vmem [shape: f32[36,768], index: 2, kind: input, shape index: {}]
  %s3 = inlined_call_operand.hbm [shape: f32[96,192], index: 3, kind: input, shape index: {}]
  %s4 = inlined_call_operand.hbm [shape: f32[1,192], index: 4, kind: input, shape index: {}]
  %s5 = inlined_call_operand.hbm [shape: f32[192,96], index: 5, kind: input, shape index: {}]
  %s6 = inlined_call_operand.vmem [shape: f32[1,96], index: 6, kind: input, shape index: {}]
  %s7 = inlined_call_operand.vmem [shape: f32[96,64], index: 7, kind: input, shape index: {}]
  %s8 = inlined_call_operand.vmem [shape: f32[1,64], index: 8, kind: input, shape index: {}]
  %s9 = inlined_call_operand.vmem [shape: f32[64,16], index: 9, kind: input, shape index: {}]
  %s10 = inlined_call_operand.vmem [shape: f32[1,16], index: 10, kind: input, shape index: {}]
  %s11 = inlined_call_operand.vmem [shape: f32[16,2], index: 11, kind: input, shape index: {}]
  %s12 = inlined_call_operand.vmem [shape: f32[1,2], index: 12, kind: input, shape index: {}]
  %s13 = inlined_call_operand.vmem [shape: f32[16,2], index: 13, kind: output, shape index: {}]
  %s14 = sld [smem:[#allocation0]]
  $region101: #{tpu_custom_call.1} parent=0
    _
  %s16 = ssub.s32 1, %s14
  %s17 = scalar_select 0, %s16, %s14
  $region1: #{tpu_custom_call.1} parent=0
    #allocation2 [shape = 'u8[8192]{0}', space=vmem, size = 0x2000, scoped, tag = 'input window, operand 1']
    #allocation3 [shape = 's32[2]{0}', space=sflag, size = 0x8, scoped, tag = 'scoped memory for tpu_custom_call.1']
    #allocation4 [shape = 'u8[98304]{0}', space=vmem, size = 0x18000, scoped, tag = 'input window, operand 3, single buffered']
    #allocation5 [shape = 's32[1]{0}', space=sflag, size = 0x4, scoped, tag = 'scoped memory for tpu_custom_call.1']
    #allocation6 [shape = 'u8[1024]{0}', space=vmem, size = 0x400, scoped, tag = 'input window, operand 4, single buffered']
    #allocation7 [shape = 'u8[98304]{0}', space=vmem, size = 0x18000, scoped, tag = 'input window, operand 5, single buffered']
    #allocation8 [shape = 's32[1]{0}', space=sflag, size = 0x4, scoped, tag = 'scoped memory for tpu_custom_call.1']
    %18 = vsyncpa [#allocation3], 0
    %s19 = scalar_lea.sflag [#allocation3], 1
    %20 = vsyncpa %s19, 0
    %21 = vsyncpa [#allocation5], 0
    %22 = vsyncpa [#allocation8], 0
    loop: start=0, step=1, limit=4
    $region2: #{tpu_custom_call.1} parent=1 // loop_pre_header
      _
    $region3: #{tpu_custom_call.1} parent=1 // loop_header
      %s24 = sphi 0, %s28
      %p25 = scmp.ge.s32.totalorder %s24, 4
      %s34 = sphi 0, %s36
      %s37 = sphi 0, %s34
      %s38 = sphi 0, %s37
      %s54 = sphi 0, %s38
      %s60 = sphi 0, %s62
      %s63 = sphi 0, %s60
      %s64 = sphi 0, %s63
      %s80 = sphi 0, %s64
      %s84 = sphi 0, %s84
      %s86 = sphi 0, %s84
      %s87 = sphi 0, %s86
      %s101 = sphi 0, %s87
      %s105 = sphi 0, %s105
      %s107 = sphi 0, %s105
      %s108 = sphi 0, %s107
      %s122 = sphi 0, %s108
      %s126 = sphi 0, %s126
      %s128 = sphi 0, %s126
      %s129 = sphi 0, %s128
      %s143 = sphi 0, %s129
      %s147 = sphi 0, %s147
      %s149 = sphi 0, %s147
      %s150 = sphi 0, %s149
      %s164 = sphi 0, %s150
      %s168 = sphi 0, %s168
      %s170 = sphi 0, %s168
      %s171 = sphi 0, %s170
      %s185 = sphi 0, %s171
      %s189 = sphi 0, %s189
      %s191 = sphi 0, %s189
      %s192 = sphi 0, %s191
      %s206 = sphi 0, %s192
      %s210 = sphi 0, %s210
      %s212 = sphi 0, %s210
      %s213 = sphi 0, %s212
      %s227 = sphi 0, %s213
      %s231 = sphi 0, %s231
      %s233 = sphi 0, %s231
      %s234 = sphi 0, %s233
      %s248 = sphi 0, %s234
      %s252 = sphi 0, %s252
      %s254 = sphi 0, %s252
      %s255 = sphi 0, %s254
      %s269 = sphi 0, %s255
      %s273 = sphi 0, %s273
      %s275 = sphi 0, %s273
      %s276 = sphi 0, %s275
      %s290 = sphi 0, %s276
      %s294 = sphi 0, %s294
      %s296 = sphi 0, %s294
      %s297 = sphi 0, %s296
      %s311 = sphi 0, %s297
      %s317 = sphi 0, %s319
      %s320 = sphi 0, %s317
      %s321 = sphi 0, %s320
      %s337 = sphi 0, %s321
    $region4: #{tpu_custom_call.1} parent=1 // loop_header_branch
      %27 = sbr.rel (%p25) target = $region8
    $region5: #{tpu_custom_call.1} parent=1 // loop_body
      %s29 = ssub.s32 %s24, 1
      %s30 = ssub.s32 %s24, 2
      %s31 = sadd.s32 %s24, 1
      %s32 = ssub.s32 %s24, %s31
      %p33 = scmp.eq.s32.totalorder %s32, 0
      %s35 = sadd.s32 %s34, 1
      %s36 = scalar_select %p33, %s34, %s35
      %p39 = pneg %p33
      %p40 = scmp.eq.s32.totalorder %s24, 1
      %p41 = por %p39, %p40
      %p42 = scmp.ne.s32.totalorder %s34, %s37
      %p43 = scmp.eq.s32.totalorder %s24, 0
      %p44 = por %p42, %p43
      %p45 = scmp.ne.s32.totalorder %s34, %s37
      %p46 = scmp.eq.s32.totalorder %s29, 1
      %p47 = por %p45, %p46
      %p48 = scmp.ne.s32.totalorder %s37, %s38
      %p49 = scmp.eq.s32.totalorder %s29, 0
      %p50 = por %p48, %p49
      %p51 = scmp.ne.s32.totalorder %s37, %s38
      %p52 = scmp.eq.s32.totalorder %s30, 1
      %p53 = por %p51, %p52
      %p55 = scmp.ne.s32.totalorder %s38, %s54
      %p56 = scmp.eq.s32.totalorder %s30, 0
      %p57 = por %p55, %p56
      %s58 = ssub.s32 %s24, %s31
      %p59 = scmp.eq.s32.totalorder %s58, 0
      %s61 = sadd.s32 %s60, 1
      %s62 = scalar_select %p59, %s60, %s61
      %p65 = pneg %p59
      %p66 = scmp.eq.s32.totalorder %s24, 1
      %p67 = por %p65, %p66
      %p68 = scmp.ne.s32.totalorder %s60, %s63
      %p69 = scmp.eq.s32.totalorder %s24, 0
      %p70 = por %p68, %p69
      %p71 = scmp.ne.s32.totalorder %s60, %s63
      %p72 = scmp.eq.s32.totalorder %s29, 1
      %p73 = por %p71, %p72
      %p74 = scmp.ne.s32.totalorder %s63, %s64
      %p75 = scmp.eq.s32.totalorder %s29, 0
      %p76 = por %p74, %p75
      %p77 = scmp.ne.s32.totalorder %s63, %s64
      %p78 = scmp.eq.s32.totalorder %s30, 1
      %p79 = por %p77, %p78
      %p81 = scmp.ne.s32.totalorder %s64, %s80
      %p82 = scmp.eq.s32.totalorder %s30, 0
      %p83 = por %p81, %p82
      %s85 = sadd.s32 %s84, 1
      %p88 = scmp.eq.s32.totalorder %s24, 1
      %p89 = scmp.ne.s32.totalorder %s84, %s86
      %p90 = scmp.eq.s32.totalorder %s24, 0
      %p91 = por %p89, %p90
      %p92 = scmp.ne.s32.totalorder %s84, %s86
      %p93 = scmp.eq.s32.totalorder %s29, 1
      %p94 = por %p92, %p93
      %p95 = scmp.ne.s32.totalorder %s86, %s87
      %p96 = scmp.eq.s32.totalorder %s29, 0
      %p97 = por %p95, %p96
      %p98 = scmp.ne.s32.totalorder %s86, %s87
      %p99 = scmp.eq.s32.totalorder %s30, 1
      %p100 = por %p98, %p99
      %p102 = scmp.ne.s32.totalorder %s87, %s101
      %p103 = scmp.eq.s32.totalorder %s30, 0
      %p104 = por %p102, %p103
      %s106 = sadd.s32 %s105, 1
      %p109 = scmp.eq.s32.totalorder %s24, 1
      %p110 = scmp.ne.s32.totalorder %s105, %s107
      %p111 = scmp.eq.s32.totalorder %s24, 0
      %p112 = por %p110, %p111
      %p113 = scmp.ne.s32.totalorder %s105, %s107
      %p114 = scmp.eq.s32.totalorder %s29, 1
      %p115 = por %p113, %p114
      %p116 = scmp.ne.s32.totalorder %s107, %s108
      %p117 = scmp.eq.s32.totalorder %s29, 0
      %p118 = por %p116, %p117
      %p119 = scmp.ne.s32.totalorder %s107, %s108
      %p120 = scmp.eq.s32.totalorder %s30, 1
      %p121 = por %p119, %p120
      %p123 = scmp.ne.s32.totalorder %s108, %s122
      %p124 = scmp.eq.s32.totalorder %s30, 0
      %p125 = por %p123, %p124
      %s127 = sadd.s32 %s126, 1
      %p130 = scmp.eq.s32.totalorder %s24, 1
      %p131 = scmp.ne.s32.totalorder %s126, %s128
      %p132 = scmp.eq.s32.totalorder %s24, 0
      %p133 = por %p131, %p132
      %p134 = scmp.ne.s32.totalorder %s126, %s128
      %p135 = scmp.eq.s32.totalorder %s29, 1
      %p136 = por %p134, %p135
      %p137 = scmp.ne.s32.totalorder %s128, %s129
      %p138 = scmp.eq.s32.totalorder %s29, 0
      %p139 = por %p137, %p138
      %p140 = scmp.ne.s32.totalorder %s128, %s129
      %p141 = scmp.eq.s32.totalorder %s30, 1
      %p142 = por %p140, %p141
      %p144 = scmp.ne.s32.totalorder %s129, %s143
      %p145 = scmp.eq.s32.totalorder %s30, 0
      %p146 = por %p144, %p145
      %s148 = sadd.s32 %s147, 1
      %p151 = scmp.eq.s32.totalorder %s24, 1
      %p152 = scmp.ne.s32.totalorder %s147, %s149
      %p153 = scmp.eq.s32.totalorder %s24, 0
      %p154 = por %p152, %p153
      %p155 = scmp.ne.s32.totalorder %s147, %s149
      %p156 = scmp.eq.s32.totalorder %s29, 1
      %p157 = por %p155, %p156
      %p158 = scmp.ne.s32.totalorder %s149, %s150
      %p159 = scmp.eq.s32.totalorder %s29, 0
      %p160 = por %p158, %p159
      %p161 = scmp.ne.s32.totalorder %s149, %s150
      %p162 = scmp.eq.s32.totalorder %s30, 1
      %p163 = por %p161, %p162
      %p165 = scmp.ne.s32.totalorder %s150, %s164
      %p166 = scmp.eq.s32.totalorder %s30, 0
      %p167 = por %p165, %p166
      %s169 = sadd.s32 %s168, 1
      %p172 = scmp.eq.s32.totalorder %s24, 1
      %p173 = scmp.ne.s32.totalorder %s168, %s170
      %p174 = scmp.eq.s32.totalorder %s24, 0
      %p175 = por %p173, %p174
      %p176 = scmp.ne.s32.totalorder %s168, %s170
      %p177 = scmp.eq.s32.totalorder %s29, 1
      %p178 = por %p176, %p177
      %p179 = scmp.ne.s32.totalorder %s170, %s171
      %p180 = scmp.eq.s32.totalorder %s29, 0
      %p181 = por %p179, %p180
      %p182 = scmp.ne.s32.totalorder %s170, %s171
      %p183 = scmp.eq.s32.totalorder %s30, 1
      %p184 = por %p182, %p183
      %p186 = scmp.ne.s32.totalorder %s171, %s185
      %p187 = scmp.eq.s32.totalorder %s30, 0
      %p188 = por %p186, %p187
      %s190 = sadd.s32 %s189, 1
      %p193 = scmp.eq.s32.totalorder %s24, 1
      %p194 = scmp.ne.s32.totalorder %s189, %s191
      %p195 = scmp.eq.s32.totalorder %s24, 0
      %p196 = por %p194, %p195
      %p197 = scmp.ne.s32.totalorder %s189, %s191
      %p198 = scmp.eq.s32.totalorder %s29, 1
      %p199 = por %p197, %p198
      %p200 = scmp.ne.s32.totalorder %s191, %s192
      %p201 = scmp.eq.s32.totalorder %s29, 0
      %p202 = por %p200, %p201
      %p203 = scmp.ne.s32.totalorder %s191, %s192
      %p204 = scmp.eq.s32.totalorder %s30, 1
      %p205 = por %p203, %p204
      %p207 = scmp.ne.s32.totalorder %s192, %s206
      %p208 = scmp.eq.s32.totalorder %s30, 0
      %p209 = por %p207, %p208
      %s211 = sadd.s32 %s210, 1
      %p214 = scmp.eq.s32.totalorder %s24, 1
      %p215 = scmp.ne.s32.totalorder %s210, %s212
      %p216 = scmp.eq.s32.totalorder %s24, 0
      %p217 = por %p215, %p216
      %p218 = scmp.ne.s32.totalorder %s210, %s212
      %p219 = scmp.eq.s32.totalorder %s29, 1
      %p220 = por %p218, %p219
      %p221 = scmp.ne.s32.totalorder %s212, %s213
      %p222 = scmp.eq.s32.totalorder %s29, 0
      %p223 = por %p221, %p222
      %p224 = scmp.ne.s32.totalorder %s212, %s213
      %p225 = scmp.eq.s32.totalorder %s30, 1
      %p226 = por %p224, %p225
      %p228 = scmp.ne.s32.totalorder %s213, %s227
      %p229 = scmp.eq.s32.totalorder %s30, 0
      %p230 = por %p228, %p229
      %s232 = sadd.s32 %s231, 1
      %p235 = scmp.eq.s32.totalorder %s24, 1
      %p236 = scmp.ne.s32.totalorder %s231, %s233
      %p237 = scmp.eq.s32.totalorder %s24, 0
      %p238 = por %p236, %p237
      %p239 = scmp.ne.s32.totalorder %s231, %s233
      %p240 = scmp.eq.s32.totalorder %s29, 1
      %p241 = por %p239, %p240
      %p242 = scmp.ne.s32.totalorder %s233, %s234
      %p243 = scmp.eq.s32.totalorder %s29, 0
      %p244 = por %p242, %p243
      %p245 = scmp.ne.s32.totalorder %s233, %s234
      %p246 = scmp.eq.s32.totalorder %s30, 1
      %p247 = por %p245, %p246
      %p249 = scmp.ne.s32.totalorder %s234, %s248
      %p250 = scmp.eq.s32.totalorder %s30, 0
      %p251 = por %p249, %p250
      %s253 = sadd.s32 %s252, 1
      %p256 = scmp.eq.s32.totalorder %s24, 1
      %p257 = scmp.ne.s32.totalorder %s252, %s254
      %p258 = scmp.eq.s32.totalorder %s24, 0
      %p259 = por %p257, %p258
      %p260 = scmp.ne.s32.totalorder %s252, %s254
      %p261 = scmp.eq.s32.totalorder %s29, 1
      %p262 = por %p260, %p261
      %p263 = scmp.ne.s32.totalorder %s254, %s255
      %p264 = scmp.eq.s32.totalorder %s29, 0
      %p265 = por %p263, %p264
      %p266 = scmp.ne.s32.totalorder %s254, %s255
      %p267 = scmp.eq.s32.totalorder %s30, 1
      %p268 = por %p266, %p267
      %p270 = scmp.ne.s32.totalorder %s255, %s269
      %p271 = scmp.eq.s32.totalorder %s30, 0
      %p272 = por %p270, %p271
      %s274 = sadd.s32 %s273, 1
      %p277 = scmp.eq.s32.totalorder %s24, 1
      %p278 = scmp.ne.s32.totalorder %s273, %s275
      %p279 = scmp.eq.s32.totalorder %s24, 0
      %p280 = por %p278, %p279
      %p281 = scmp.ne.s32.totalorder %s273, %s275
      %p282 = scmp.eq.s32.totalorder %s29, 1
      %p283 = por %p281, %p282
      %p284 = scmp.ne.s32.totalorder %s275, %s276
      %p285 = scmp.eq.s32.totalorder %s29, 0
      %p286 = por %p284, %p285
      %p287 = scmp.ne.s32.totalorder %s275, %s276
      %p288 = scmp.eq.s32.totalorder %s30, 1
      %p289 = por %p287, %p288
      %p291 = scmp.ne.s32.totalorder %s276, %s290
      %p292 = scmp.eq.s32.totalorder %s30, 0
      %p293 = por %p291, %p292
      %s295 = sadd.s32 %s294, 1
      %p298 = scmp.eq.s32.totalorder %s24, 1
      %p299 = scmp.ne.s32.totalorder %s294, %s296
      %p300 = scmp.eq.s32.totalorder %s24, 0
      %p301 = por %p299, %p300
      %p302 = scmp.ne.s32.totalorder %s294, %s296
      %p303 = scmp.eq.s32.totalorder %s29, 1
      %p304 = por %p302, %p303
      %p305 = scmp.ne.s32.totalorder %s296, %s297
      %p306 = scmp.eq.s32.totalorder %s29, 0
      %p307 = por %p305, %p306
      %p308 = scmp.ne.s32.totalorder %s296, %s297
      %p309 = scmp.eq.s32.totalorder %s30, 1
      %p310 = por %p308, %p309
      %p312 = scmp.ne.s32.totalorder %s297, %s311
      %p313 = scmp.eq.s32.totalorder %s30, 0
      %p314 = por %p312, %p313
      %s315 = ssub.s32 %s24, %s31
      %p316 = scmp.eq.s32.totalorder %s315, 0
      %s318 = sadd.s32 %s317, 1
      %s319 = scalar_select %p316, %s317, %s318
      %p322 = pneg %p316
      %p323 = scmp.eq.s32.totalorder %s24, 1
      %p324 = por %p322, %p323
      %p325 = scmp.ne.s32.totalorder %s317, %s320
      %p326 = scmp.eq.s32.totalorder %s24, 0
      %p327 = por %p325, %p326
      %p328 = scmp.ne.s32.totalorder %s317, %s320
      %p329 = scmp.eq.s32.totalorder %s29, 1
      %p330 = por %p328, %p329
      %p331 = scmp.ne.s32.totalorder %s320, %s321
      %p332 = scmp.eq.s32.totalorder %s29, 0
      %p333 = por %p331, %p332
      %p334 = scmp.ne.s32.totalorder %s320, %s321
      %p335 = scmp.eq.s32.totalorder %s30, 1
      %p336 = por %p334, %p335
      %p338 = scmp.ne.s32.totalorder %s321, %s337
      %p339 = scmp.eq.s32.totalorder %s30, 0
      %p340 = por %p338, %p339
      %p341 = scmp.le.s32.totalorder 1, %s24
      %p342 = scmp.lt.s32.totalorder %s24, 3
      %p343 = pnand %p341, %p342
      %p344 = pneg %p343
      // Predicated region
      $region9: #{tpu_custom_call.1} parent=5 // pred_check
        _
      $region10: #{tpu_custom_call.1} parent=5 // pred_check_branch
        %346 = sbr.rel (%p343) target = $region12
      $region11: #{tpu_custom_call.1} parent=5 // pred_region
        %s347 = ssub.s32 %s24, 1
        // Predicated region
        $region13: #{tpu_custom_call.1} parent=11 // pred_check
          %p348 = pneg %p97
        $region14: #{tpu_custom_call.1} parent=11 // pred_check_branch
          %350 = sbr.rel (%p348) target = $region16
        $region15: #{tpu_custom_call.1} parent=11 // pred_region
          _
        $region16: #{tpu_custom_call.1} parent=11 // pred_fallthru
          _
        // Predicated region
        $region17: #{tpu_custom_call.1} parent=11 // pred_check
          %p351 = pneg %p118
        $region18: #{tpu_custom_call.1} parent=11 // pred_check_branch
          %353 = sbr.rel (%p351) target = $region20
        $region19: #{tpu_custom_call.1} parent=11 // pred_region
          %s355 = ssub.s32 3072, 3072
          %356 = vsyncadd [#allocation5], %s355
          %s357 = sshll.u32 [#allocation4], 4
          %s358 = int_to_ptr.vmem [resolvable:$true] %s357
          %363 = dma.hbm_to_vmem [thread:$0]  %s3, 3072, %s358, [#allocation5], 256, 256, 16
        $region20: #{tpu_custom_call.1} parent=11 // pred_fallthru
          _
        // Predicated region
        $region21: #{tpu_custom_call.1} parent=11 // pred_check
          %p364 = pneg %p139
        $region22: #{tpu_custom_call.1} parent=11 // pred_check_branch
          %366 = sbr.rel (%p364) target = $region24
        $region23: #{tpu_custom_call.1} parent=11 // pred_region
          %s368 = ssub.s32 32, 32
          %369 = vsyncadd [#allocation5], %s368
          %s371 = sshll.u32 [#allocation6], 4
          %s372 = int_to_ptr.vmem [resolvable:$true] %s371
          %374 = dma.hbm_to_vmem [thread:$0]  %s4, 32, %s372, [#allocation5]
        $region24: #{tpu_custom_call.1} parent=11 // pred_fallthru
          _
        // Predicated region
        $region25: #{tpu_custom_call.1} parent=11 // pred_check
          %p375 = pneg %p160
        $region26: #{tpu_custom_call.1} parent=11 // pred_check_branch
          %377 = sbr.rel (%p375) target = $region28
        $region27: #{tpu_custom_call.1} parent=11 // pred_region
          %s379 = ssub.s32 3072, 3072
          %380 = vsyncadd [#allocation8], %s379
          %s381 = sshll.u32 [#allocation7], 4
          %s382 = int_to_ptr.vmem [resolvable:$true] %s381
          %387 = dma.hbm_to_vmem [thread:$0]  %s5, 3072, %s382, [#allocation8], 128, 128, 8
        $region28: #{tpu_custom_call.1} parent=11 // pred_fallthru
          _
        // Predicated region
        $region29: #{tpu_custom_call.1} parent=11 // pred_check
          %p388 = pneg %p181
        $region30: #{tpu_custom_call.1} parent=11 // pred_check_branch
          %390 = sbr.rel (%p388) target = $region32
        $region31: #{tpu_custom_call.1} parent=11 // pred_region
          _
        $region32: #{tpu_custom_call.1} parent=11 // pred_fallthru
          _
        // Predicated region
        $region33: #{tpu_custom_call.1} parent=11 // pred_check
          %p391 = pneg %p202
        $region34: #{tpu_custom_call.1} parent=11 // pred_check_branch
          %393 = sbr.rel (%p391) target = $region36
        $region35: #{tpu_custom_call.1} parent=11 // pred_region
          _
        $region36: #{tpu_custom_call.1} parent=11 // pred_fallthru
          _
        // Predicated region
        $region37: #{tpu_custom_call.1} parent=11 // pred_check
          %p394 = pneg %p223
        $region38: #{tpu_custom_call.1} parent=11 // pred_check_branch
          %396 = sbr.rel (%p394) target = $region40
        $region39: #{tpu_custom_call.1} parent=11 // pred_region
          _
        $region40: #{tpu_custom_call.1} parent=11 // pred_fallthru
          _
        // Predicated region
        $region41: #{tpu_custom_call.1} parent=11 // pred_check
          %p397 = pneg %p244
        $region42: #{tpu_custom_call.1} parent=11 // pred_check_branch
          %399 = sbr.rel (%p397) target = $region44
        $region43: #{tpu_custom_call.1} parent=11 // pred_region
          _
        $region44: #{tpu_custom_call.1} parent=11 // pred_fallthru
          _
        // Predicated region
        $region45: #{tpu_custom_call.1} parent=11 // pred_check
          %p400 = pneg %p265
        $region46: #{tpu_custom_call.1} parent=11 // pred_check_branch
          %402 = sbr.rel (%p400) target = $region48
        $region47: #{tpu_custom_call.1} parent=11 // pred_region
          _
        $region48: #{tpu_custom_call.1} parent=11 // pred_fallthru
          _
        // Predicated region
        $region49: #{tpu_custom_call.1} parent=11 // pred_check
          %p403 = pneg %p286
        $region50: #{tpu_custom_call.1} parent=11 // pred_check_branch
          %405 = sbr.rel (%p403) target = $region52
        $region51: #{tpu_custom_call.1} parent=11 // pred_region
          _
        $region52: #{tpu_custom_call.1} parent=11 // pred_fallthru
          _
        // Predicated region
        $region53: #{tpu_custom_call.1} parent=11 // pred_check
          %p406 = pneg %p307
        $region54: #{tpu_custom_call.1} parent=11 // pred_check_branch
          %408 = sbr.rel (%p406) target = $region56
        $region55: #{tpu_custom_call.1} parent=11 // pred_region
          _
        $region56: #{tpu_custom_call.1} parent=11 // pred_fallthru
          _
      $region12: #{tpu_custom_call.1} parent=5 // pred_fallthru
        _
      %p409 = scmp.lt.s32.totalorder %s24, 2
      // Predicated region
      $region57: #{tpu_custom_call.1} parent=5 // pred_check
        %p410 = pneg %p409
      $region58: #{tpu_custom_call.1} parent=5 // pred_check_branch
        %412 = sbr.rel (%p410) target = $region60
      $region59: #{tpu_custom_call.1} parent=5 // pred_region
        // Predicated region
        $region61: #{tpu_custom_call.1} parent=59 // pred_check
          %p413 = pneg %p44
        $region62: #{tpu_custom_call.1} parent=59 // pred_check_branch
          %415 = sbr.rel (%p413) target = $region64
        $region63: #{tpu_custom_call.1} parent=59 // pred_region
          %p416 = scmp.lt.s32.totalorder %s24, 1
          %s417 = scalar_select %p416, %s24, 1
          %s418 = smul.addr %s417, 8
          %s419 = scalar_lea.vmem %s0, %s418
        $region64: #{tpu_custom_call.1} parent=59 // pred_fallthru
          _
        // Predicated region
        $region65: #{tpu_custom_call.1} parent=59 // pred_check
          %p420 = pneg %p70
        $region66: #{tpu_custom_call.1} parent=59 // pred_check_branch
          %422 = sbr.rel (%p420) target = $region68
        $region67: #{tpu_custom_call.1} parent=59 // pred_region
          %s423 = sand.u32 %s60, 1
          %s424 = scalar_lea.sflag [#allocation3], %s423
          %s425 = sand.u32 %s60, 1
          %s426 = smul.addr %s425, 8
          %s427 = scalar_lea.vmem [#allocation2], %s426
          %s429 = ssub.s32 128, 128
          %430 = vsyncadd %s424, %s429
          %s431 = smul.addr %s24, 128
          %s432 = scalar_lea.hbm %s1, %s431
          %s434 = sshll.u32 %s427, 4
          %s435 = int_to_ptr.vmem [resolvable:$true] %s434
          %437 = dma.hbm_to_vmem [thread:$0]  %s432, 128, %s435, %s424
        $region68: #{tpu_custom_call.1} parent=59 // pred_fallthru
          _
      $region60: #{tpu_custom_call.1} parent=5 // pred_fallthru
        _
      %p438 = scmp.le.s32.totalorder 1, %s24
      %p439 = scmp.lt.s32.totalorder %s24, 3
      %p440 = pnand %p438, %p439
      %p441 = pneg %p440
      // Predicated region
      $region69: #{tpu_custom_call.1} parent=5 // pred_check
        _
      $region70: #{tpu_custom_call.1} parent=5 // pred_check_branch
        %443 = sbr.rel (%p440) target = $region72
      $region71: #{tpu_custom_call.1} parent=5 // pred_region
        %s444 = ssub.s32 %s24, 1
        %s445 = sand.u32 %s63, 1
        %s446 = scalar_lea.sflag [#allocation3], %s445
        %s447 = sand.u32 %s63, 1
        %s448 = smul.addr %s447, 8
        %s449 = scalar_lea.vmem [#allocation2], %s448
        // Predicated region
        $region73: #{tpu_custom_call.1} parent=71 // pred_check
          %p450 = pneg %p76
        $region74: #{tpu_custom_call.1} parent=71 // pred_check_branch
          %452 = sbr.rel (%p450) target = $region76
        $region75: #{tpu_custom_call.1} parent=71 // pred_region
          %453 = dma.done %s446, 128
        $region76: #{tpu_custom_call.1} parent=71 // pred_fallthru
          _
        // Predicated region
        $region77: #{tpu_custom_call.1} parent=71 // pred_check
          %p454 = pneg %p118
        $region78: #{tpu_custom_call.1} parent=71 // pred_check_branch
          %456 = sbr.rel (%p454) target = $region80
        $region79: #{tpu_custom_call.1} parent=71 // pred_region
          %457 = dma.done [#allocation5], 3072
        $region80: #{tpu_custom_call.1} parent=71 // pred_fallthru
          _
        // Predicated region
        $region81: #{tpu_custom_call.1} parent=71 // pred_check
          %p458 = pneg %p139
        $region82: #{tpu_custom_call.1} parent=71 // pred_check_branch
          %460 = sbr.rel (%p458) target = $region84
        $region83: #{tpu_custom_call.1} parent=71 // pred_region
          %461 = dma.done [#allocation5], 32
        $region84: #{tpu_custom_call.1} parent=71 // pred_fallthru
          _
        // Predicated region
        $region85: #{tpu_custom_call.1} parent=71 // pred_check
          %p462 = pneg %p160
        $region86: #{tpu_custom_call.1} parent=71 // pred_check_branch
          %464 = sbr.rel (%p462) target = $region88
        $region87: #{tpu_custom_call.1} parent=71 // pred_region
          %465 = dma.done [#allocation8], 3072
        $region88: #{tpu_custom_call.1} parent=71 // pred_fallthru
          _
        %p466 = scmp.lt.s32.totalorder %s29, 1
        %s467 = scalar_select %p466, %s29, 1
        %s468 = smul.addr %s467, 8
        %s469 = scalar_lea.vmem %s0, %s468
        %p470 = pneg %p50
        %p471 = pneg %p47
        %s472 = sand.u32 %s63, 1
        %s473 = scalar_lea.sflag [#allocation3], %s472
        %s474 = sand.u32 %s63, 1
        %s475 = smul.addr %s474, 8
        %s476 = scalar_lea.vmem [#allocation2], %s475
        %p477 = pneg %p76
        %p478 = pneg %p73
        %p479 = pneg %p97
        %p480 = pneg %p94
        %p481 = pneg %p118
        %p482 = pneg %p115
        %p483 = pneg %p139
        %p484 = pneg %p136
        %p485 = pneg %p160
        %p486 = pneg %p157
        %p487 = pneg %p181
        %p488 = pneg %p178
        %p489 = pneg %p202
        %p490 = pneg %p199
        %p491 = pneg %p223
        %p492 = pneg %p220
        %p493 = pneg %p244
        %p494 = pneg %p241
        %p495 = pneg %p265
        %p496 = pneg %p262
        %p497 = pneg %p286
        %p498 = pneg %p283
        %p499 = pneg %p307
        %p500 = pneg %p304
        %p501 = pneg %p333
        %p502 = pneg %p330
        %p503 = scmp.lt.s32.totalorder %s29, 1
        %s504 = scalar_select %p503, %s29, 1
        %s505 = smul.addr %s504, 8
        %s506 = scalar_lea.vmem %s13, %s505
        %p507 = scmp.lt.s32.totalorder %s29, 1
        %s508 = scalar_select %p507, %s29, 1
        %s509 = smul.addr %s508, 8
        %s510 = scalar_lea.vmem %s0, %s509
        %p511 = scmp.lt.s32.totalorder %s29, 1
        %s512 = scalar_select %p511, %s29, 1
        %s513 = smul.addr %s512, 8
        %s514 = scalar_lea.vmem %s13, %s513
        %v515 = vld [vmem:[%s510] sm:$0xff]
        %v516 = vld [vmem:[%s449] sm:$0xff]
        %v517 = vld [vmem:[#allocation4] sm:$0xff]
        %v518 = vld [vmem:[#allocation4 + $0x8] sm:$0xff]
        %v519 = vld [vmem:[#allocation4 + $0x10] sm:$0xff]
        %v520 = vld [vmem:[#allocation4 + $0x18] sm:$0xff]
        %v521 = vld [vmem:[#allocation4 + $0x20] sm:$0xff]
        %v522 = vld [vmem:[#allocation4 + $0x28] sm:$0xff]
        %v523 = vld [vmem:[#allocation4 + $0x30] sm:$0xff]
        %v524 = vld [vmem:[#allocation4 + $0x38] sm:$0xff]
        %v525 = vld [vmem:[#allocation4 + $0x40] sm:$0xff]
        %v526 = vld [vmem:[#allocation4 + $0x48] sm:$0xff]
        %v527 = vld [vmem:[#allocation4 + $0x50] sm:$0xff]
        %v528 = vld [vmem:[#allocation4 + $0x58] sm:$0xff]
        %v529 = vld [vmem:[#allocation4 + $0x60] sm:$0xff]
        %v530 = vld [vmem:[#allocation4 + $0x68] sm:$0xff]
        %v531 = vld [vmem:[#allocation4 + $0x70] sm:$0xff]
        %v532 = vld [vmem:[#allocation4 + $0x78] sm:$0xff]
        %v533 = vld [vmem:[#allocation4 + $0x80] sm:$0xff]
        %v534 = vld [vmem:[#allocation4 + $0x88] sm:$0xff]
        %v535 = vld [vmem:[#allocation4 + $0x90] sm:$0xff]
        %v536 = vld [vmem:[#allocation4 + $0x98] sm:$0xff]
        %v537 = vld [vmem:[#allocation4 + $0xa0] sm:$0xff]
        %v538 = vld [vmem:[#allocation4 + $0xa8] sm:$0xff]
        %v539 = vld [vmem:[#allocation4 + $0xb0] sm:$0xff]
        %v540 = vld [vmem:[#allocation4 + $0xb8] sm:$0xff]
        %v541 = vld [vmem:[#allocation7] sm:$0xff]
        %v542 = vld [vmem:[#allocation7 + $0x8] sm:$0xff]
        %v543 = vld [vmem:[#allocation7 + $0x10] sm:$0xff]
        %v544 = vld [vmem:[#allocation7 + $0x18] sm:$0xff]
        %v545 = vld [vmem:[#allocation7 + $0x20] sm:$0xff]
        %v546 = vld [vmem:[#allocation7 + $0x28] sm:$0xff]
        %v547 = vld [vmem:[#allocation7 + $0x30] sm:$0xff]
        %v548 = vld [vmem:[#allocation7 + $0x38] sm:$0xff]
        %v549 = vld [vmem:[#allocation7 + $0x40] sm:$0xff]
        %v550 = vld [vmem:[#allocation7 + $0x48] sm:$0xff]
        %v551 = vld [vmem:[#allocation7 + $0x50] sm:$0xff]
        %v552 = vld [vmem:[#allocation7 + $0x58] sm:$0xff]
        %v553 = vld [vmem:[#allocation7 + $0x60] sm:$0xff]
        %v554 = vld [vmem:[#allocation7 + $0x68] sm:$0xff]
        %v555 = vld [vmem:[#allocation7 + $0x70] sm:$0xff]
        %v556 = vld [vmem:[#allocation7 + $0x78] sm:$0xff]
        %v557 = vld [vmem:[#allocation7 + $0x80] sm:$0xff]
        %v558 = vld [vmem:[#allocation7 + $0x88] sm:$0xff]
        %v559 = vld [vmem:[#allocation7 + $0x90] sm:$0xff]
        %v560 = vld [vmem:[#allocation7 + $0x98] sm:$0xff]
        %v561 = vld [vmem:[#allocation7 + $0xa0] sm:$0xff]
        %v562 = vld [vmem:[#allocation7 + $0xa8] sm:$0xff]
        %v563 = vld [vmem:[#allocation7 + $0xb0] sm:$0xff]
        %v564 = vld [vmem:[#allocation7 + $0xb8] sm:$0xff]
        %v565 = vld [vmem:[%s2] sm:$0xff]
        %v566 = vld [vmem:[%s2 + $0x8] sm:$0xff]
        %v567 = vld [vmem:[%s2 + $0x10] sm:$0xff]
        %v568 = vld [vmem:[%s2 + $0x18] sm:$0xff]
        %v569 = vld [vmem:[%s2 + $0x20] sm:$0xff]
        %v570 = vld [vmem:[%s2 + $0x28] sm:$0xff]
        %v571 = vld [vmem:[%s2 + $0x30] sm:$0xff]
        %v572 = vld [vmem:[%s2 + $0x38] sm:$0xff]
        %v573 = vld [vmem:[%s2 + $0x40] sm:$0xff]
        %v574 = vld [vmem:[%s2 + $0x48] sm:$0xff]
        %v575 = vld [vmem:[%s2 + $0x50] sm:$0xff]
        %v576 = vld [vmem:[%s2 + $0x58] sm:$0xff]
        %v577 = vld [vmem:[%s2 + $0x60] sm:$0xff]
        %v578 = vld [vmem:[%s2 + $0x68] sm:$0xff]
        %v579 = vld [vmem:[%s2 + $0x70] sm:$0xff]
        %v580 = vld [vmem:[%s2 + $0x78] sm:$0xff]
        %v581 = vld [vmem:[%s2 + $0x80] sm:$0xff]
        %v582 = vld [vmem:[%s2 + $0x88] sm:$0xff]
        %v583 = vld [vmem:[%s2 + $0x90] sm:$0xff]
        %v584 = vld [vmem:[%s2 + $0x98] sm:$0xff]
        %v585 = vld [vmem:[%s2 + $0xa0] sm:$0xff]
        %v586 = vld [vmem:[%s2 + $0xa8] sm:$0xff]
        %v587 = vld [vmem:[%s2 + $0xb0] sm:$0xff]
        %v588 = vld [vmem:[%s2 + $0xb8] sm:$0xff]
        %v589 = vld [vmem:[%s2 + $0xc0] sm:$0xf]
        %v590 = vld [vmem:[%s2 + $0xc8] sm:$0xf]
        %v591 = vld [vmem:[%s2 + $0xd0] sm:$0xf]
        %v592 = vld [vmem:[%s2 + $0xd8] sm:$0xf]
        %v593 = vld [vmem:[%s2 + $0xe0] sm:$0xf]
        %v594 = vld [vmem:[%s2 + $0xe8] sm:$0xf]
        %vm595 = vcmask 293888
        %v597 = vsel %vm595, %v516, 0
        %vm599 = vcmask 1043456
        %v601 = vsel %vm599, %v589, 0
        %v604 = vsel %vm599, %v590, 0
        %v607 = vsel %vm599, %v591, 0
        %v610 = vsel %vm599, %v592, 0
        %v613 = vsel %vm599, %v593, 0
        %v616 = vsel %vm599, %v594, 0
        %618 = vmatprep.subr.mxu0 %v566
        %619 = vmatpush1.msra.mxu0 %v565
        %620 = vmatprep.subr.mxu0 %v572
        %621 = vmatpush1.msra.mxu0 %v571
        %622 = vmatprep.subr.mxu0 %v578
        %623 = vmatpush1.msra.mxu0 %v577
        %624 = vmatprep.subr.mxu0 %v584
        %625 = vmatpush1.msra.mxu0 %v583
        %626 = vmatprep.subr.mxu0 %v604
        %627 = vmatpush1.msra.mxu0 %v601
        %628 = vmatprep.subr.mxu0 0.0
        %629 = vmatpush1.msra.mxu0 0.0
        %630 = vmatprep.subr.mxu0 0.0
        %631 = vmatpush1.msra.mxu0 0.0
        %632 = vmatprep.subr.mxu0 0.0
        %633 = vmatpush1.msra.mxu0 0.0
        %634 = vmatprep.subr.mxu0 0.0
        %635 = vmatpush1.msra.mxu0 0.0
        %636 = vmatprep.subr.mxu0 0.0
        %637 = vmatpush1.msra.mxu0 0.0
        %638 = vmatprep.subr.mxu0 0.0
        %639 = vmatpush1.msra.mxu0 0.0
        %640 = vmatprep.subr.mxu0 0.0
        %641 = vmatpush1.msra.mxu0 0.0
        %642 = vmatprep.subr.mxu0 0.0
        %643 = vmatpush1.msra.mxu0 0.0
        %644 = vmatprep.subr.mxu0 0.0
        %645 = vmatpush1.msra.mxu0 0.0
        %646 = vmatprep.subr.mxu0 0.0
        %647 = vmatpush1.msra.mxu0 0.0
        %648 = vmatprep.subr.mxu0 0.0
        %649 = vmatpush1.msra.mxu0 0.0
        %650 = vmatprep.subr.mxu0 0.0
        %651 = vmatpush1.msra.mxu0 0.0
        %652 = vmatprep.subr.mxu0 0.0
        %653 = vmatpush1.msra.mxu0 0.0
        %654 = vmatprep.subr.mxu0 0.0
        %655 = vmatpush1.msra.mxu0 0.0
        %656 = vmatprep.subr.mxu0 0.0
        %657 = vmatpush1.msra.mxu0 0.0
        %658 = vmatprep.subr.mxu0 0.0
        %659 = vmatpush1.msra.mxu0 0.0
        %660 = vmatprep.subr.mxu0 0.0
        %661 = vmatpush1.msra.mxu0 0.0
        %662 = vmatprep.subr.mxu0 0.0
        %663 = vmatpush1.msra.mxu0 0.0
        %664 = vmatprep.subr.mxu0 0.0
        %665 = vmatpush1.msra.mxu0 0.0
        %666 = vmatprep.subr.mxu0 0.0
        %667 = vmatpush1.msra.mxu0 0.0
        %668 = vmatprep.subr.mxu0 0.0
        %669 = vmatpush1.msra.mxu0 0.0
        %670 = vmatprep.subr.mxu0 0.0
        %671 = vmatpush1.msra.mxu0 0.0
        %672 = vmatprep.subr.mxu0 0.0
        %673 = vmatpush1.msra.mxu0 0.0
        %674 = vmatprep.subr.mxu0 0.0
        %675 = vmatpush1.msra.mxu0 0.0
        %676 = vmatprep.subr.mxu0 0.0
        %677 = vmatpush1.msra.mxu0 0.0
        %678 = vmatprep.subr.mxu0 0.0
        %679 = vmatpush1.msra.mxu0 0.0
        %680 = vmatprep.subr.mxu0 0.0
        %681 = vmatpush1.msra.mxu0 0.0
        %682 = vmatprep.mubr.f32.mxu0 0.0
        %683 = vmatmul.mubr.f32.gmra.mrb[0].mxu0 %v597
        %v684 = vpop.f32.mrb[0].mxu0
        %v685 = vadd.f32 0.0, %v684
        %v686 = vpop.f32.mrb[0].mxu0
        %v687 = vadd.f32 0.0, %v686
        %688 = vdwg.mxu0
        %689 = vmatprep.subr.mxu0 %v568
        %690 = vmatpush1.msra.mxu0 %v567
        %691 = vmatprep.subr.mxu0 %v574
        %692 = vmatpush1.msra.mxu0 %v573
        %693 = vmatprep.subr.mxu0 %v580
        %694 = vmatpush1.msra.mxu0 %v579
        %695 = vmatprep.subr.mxu0 %v586
        %696 = vmatpush1.msra.mxu0 %v585
        %697 = vmatprep.subr.mxu0 %v610
        %698 = vmatpush1.msra.mxu0 %v607
        %699 = vmatprep.subr.mxu0 0.0
        %700 = vmatpush1.msra.mxu0 0.0
        %701 = vmatprep.subr.mxu0 0.0
        %702 = vmatpush1.msra.mxu0 0.0
        %703 = vmatprep.subr.mxu0 0.0
        %704 = vmatpush1.msra.mxu0 0.0
        %705 = vmatprep.subr.mxu0 0.0
        %706 = vmatpush1.msra.mxu0 0.0
        %707 = vmatprep.subr.mxu0 0.0
        %708 = vmatpush1.msra.mxu0 0.0
        %709 = vmatprep.subr.mxu0 0.0
        %710 = vmatpush1.msra.mxu0 0.0
        %711 = vmatprep.subr.mxu0 0.0
        %712 = vmatpush1.msra.mxu0 0.0
        %713 = vmatprep.subr.mxu0 0.0
        %714 = vmatpush1.msra.mxu0 0.0
        %715 = vmatprep.subr.mxu0 0.0
        %716 = vmatpush1.msra.mxu0 0.0
        %717 = vmatprep.subr.mxu0 0.0
        %718 = vmatpush1.msra.mxu0 0.0
        %719 = vmatprep.subr.mxu0 0.0
        %720 = vmatpush1.msra.mxu0 0.0
        %721 = vmatprep.subr.mxu0 0.0
        %722 = vmatpush1.msra.mxu0 0.0
        %723 = vmatprep.subr.mxu0 0.0
        %724 = vmatpush1.msra.mxu0 0.0
        %725 = vmatprep.subr.mxu0 0.0
        %726 = vmatpush1.msra.mxu0 0.0
        %727 = vmatprep.subr.mxu0 0.0
        %728 = vmatpush1.msra.mxu0 0.0
        %729 = vmatprep.subr.mxu0 0.0
        %730 = vmatpush1.msra.mxu0 0.0
        %731 = vmatprep.subr.mxu0 0.0
        %732 = vmatpush1.msra.mxu0 0.0
        %733 = vmatprep.subr.mxu0 0.0
        %734 = vmatpush1.msra.mxu0 0.0
        %735 = vmatprep.subr.mxu0 0.0
        %736 = vmatpush1.msra.mxu0 0.0
        %737 = vmatprep.subr.mxu0 0.0
        %738 = vmatpush1.msra.mxu0 0.0
        %739 = vmatprep.subr.mxu0 0.0
        %740 = vmatpush1.msra.mxu0 0.0
        %741 = vmatprep.subr.mxu0 0.0
        %742 = vmatpush1.msra.mxu0 0.0
        %743 = vmatprep.subr.mxu0 0.0
        %744 = vmatpush1.msra.mxu0 0.0
        %745 = vmatprep.subr.mxu0 0.0
        %746 = vmatpush1.msra.mxu0 0.0
        %747 = vmatprep.subr.mxu0 0.0
        %748 = vmatpush1.msra.mxu0 0.0
        %749 = vmatprep.subr.mxu0 0.0
        %750 = vmatpush1.msra.mxu0 0.0
        %751 = vmatprep.subr.mxu0 0.0
        %752 = vmatpush1.msra.mxu0 0.0
        %753 = vmatprep.mubr.f32.mxu0 0.0
        %754 = vmatmul.mubr.f32.gmra.mrb[0].mxu0 %v597
        %v755 = vpop.f32.mrb[0].mxu0
        %v756 = vadd.f32 0.0, %v755
        %v757 = vpop.f32.mrb[0].mxu0
        %v758 = vadd.f32 0.0, %v757
        %759 = vdwg.mxu0
        %760 = vmatprep.subr.mxu0 %v570
        %761 = vmatpush1.msra.mxu0 %v569
        %762 = vmatprep.subr.mxu0 %v576
        %763 = vmatpush1.msra.mxu0 %v575
        %764 = vmatprep.subr.mxu0 %v582
        %765 = vmatpush1.msra.mxu0 %v581
        %766 = vmatprep.subr.mxu0 %v588
        %767 = vmatpush1.msra.mxu0 %v587
        %768 = vmatprep.subr.mxu0 %v616
        %769 = vmatpush1.msra.mxu0 %v613
        %770 = vmatprep.subr.mxu0 0.0
        %771 = vmatpush1.msra.mxu0 0.0
        %772 = vmatprep.subr.mxu0 0.0
        %773 = vmatpush1.msra.mxu0 0.0
        %774 = vmatprep.subr.mxu0 0.0
        %775 = vmatpush1.msra.mxu0 0.0
        %776 = vmatprep.subr.mxu0 0.0
        %777 = vmatpush1.msra.mxu0 0.0
        %778 = vmatprep.subr.mxu0 0.0
        %779 = vmatpush1.msra.mxu0 0.0
        %780 = vmatprep.subr.mxu0 0.0
        %781 = vmatpush1.msra.mxu0 0.0
        %782 = vmatprep.subr.mxu0 0.0
        %783 = vmatpush1.msra.mxu0 0.0
        %784 = vmatprep.subr.mxu0 0.0
        %785 = vmatpush1.msra.mxu0 0.0
        %786 = vmatprep.subr.mxu0 0.0
        %787 = vmatpush1.msra.mxu0 0.0
        %788 = vmatprep.subr.mxu0 0.0
        %789 = vmatpush1.msra.mxu0 0.0
        %790 = vmatprep.subr.mxu0 0.0
        %791 = vmatpush1.msra.mxu0 0.0
        %792 = vmatprep.subr.mxu0 0.0
        %793 = vmatpush1.msra.mxu0 0.0
        %794 = vmatprep.subr.mxu0 0.0
        %795 = vmatpush1.msra.mxu0 0.0
        %796 = vmatprep.subr.mxu0 0.0
        %797 = vmatpush1.msra.mxu0 0.0
        %798 = vmatprep.subr.mxu0 0.0
        %799 = vmatpush1.msra.mxu0 0.0
        %800 = vmatprep.subr.mxu0 0.0
        %801 = vmatpush1.msra.mxu0 0.0
        %802 = vmatprep.subr.mxu0 0.0
        %803 = vmatpush1.msra.mxu0 0.0
        %804 = vmatprep.subr.mxu0 0.0
        %805 = vmatpush1.msra.mxu0 0.0
        %806 = vmatprep.subr.mxu0 0.0
        %807 = vmatpush1.msra.mxu0 0.0
        %808 = vmatprep.subr.mxu0 0.0
        %809 = vmatpush1.msra.mxu0 0.0
        %810 = vmatprep.subr.mxu0 0.0
        %811 = vmatpush1.msra.mxu0 0.0
        %812 = vmatprep.subr.mxu0 0.0
        %813 = vmatpush1.msra.mxu0 0.0
        %814 = vmatprep.subr.mxu0 0.0
        %815 = vmatpush1.msra.mxu0 0.0
        %816 = vmatprep.subr.mxu0 0.0
        %817 = vmatpush1.msra.mxu0 0.0
        %818 = vmatprep.subr.mxu0 0.0
        %819 = vmatpush1.msra.mxu0 0.0
        %820 = vmatprep.subr.mxu0 0.0
        %821 = vmatpush1.msra.mxu0 0.0
        %822 = vmatprep.subr.mxu0 0.0
        %823 = vmatpush1.msra.mxu0 0.0
        %824 = vmatprep.mubr.f32.mxu0 0.0
        %825 = vmatmul.mubr.f32.gmra.mrb[0].mxu0 %v597
        %v826 = vpop.f32.mrb[0].mxu0
        %v827 = vadd.f32 0.0, %v826
        %v828 = vpop.f32.mrb[0].mxu0
        %v829 = vadd.f32 0.0, %v828
        %830 = vdwg.mxu0
        %v831 = vmul.f32 %v685, %v515
        %833 = vrot.lane.b32.xlu0 %v515, 112
        %v834 = vpop.permute.xlu0 %833
        %836 = vrot.lane.b32.xlu0 %v515, 80
        %v837 = vpop.permute.xlu0 %836
        %vm839 = vcmask 654336
        %v840 = vsel %vm839, %v834, %v837
        %v841 = vmul.f32 %v687, %v840
        %v842 = vadd.f32 %v831, %v841
        %843 = vrot.lane.b32.xlu0 %v515, 96
        %v844 = vpop.permute.xlu0 %843
        %846 = vrot.lane.b32.xlu0 %v515, 64
        %v847 = vpop.permute.xlu0 %846
        %vm849 = vcmask 523264
        %v850 = vsel %vm849, %v844, %v847
        %v851 = vmul.f32 %v756, %v850
        %v852 = vadd.f32 %v842, %v851
        %853 = vrot.lane.b32.xlu0 %v515, 48
        %v854 = vpop.permute.xlu0 %853
        %vm856 = vcmask 392192
        %v857 = vsel %vm856, %v837, %v854
        %v858 = vmul.f32 %v758, %v857
        %v859 = vadd.f32 %v852, %v858
        %860 = vrot.lane.b32.xlu0 %v515, 32
        %v861 = vpop.permute.xlu0 %860
        %vm863 = vcmask 261120
        %v864 = vsel %vm863, %v847, %v861
        %v865 = vmul.f32 %v827, %v864
        %v866 = vadd.f32 %v859, %v865
        %867 = vrot.lane.b32.xlu0 %v515, 16
        %v868 = vpop.permute.xlu0 %867
        %vm870 = vcmask 130048
        %v871 = vsel %vm870, %v854, %v868
        %v872 = vmul.f32 %v829, %v871
        %v873 = vadd.f32 %v866, %v872
        %v874 = vld [vmem:[#allocation6] sm:$0x3]
        %v876 = vlaneseq
        %v877 = vshrl.u32 %v876, 7
        %v878 = vsub.s32 0, %v877
        %v879 = vrot.slane %v874, %v878
        %v880 = vlaneseq
        %v881 = vshrl.u32 %v880, 7
        %v882 = vsub.s32 1, %v881
        %v883 = vrot.slane %v874, %v882
        %vm886 = vcmask 785408
        %v888 = vsel %vm886, %v873, 0
        %890 = vmatprep.subr.mxu0 %v518
        %891 = vmatpush1.msra.mxu0 %v517
        %892 = vmatprep.subr.mxu0 %v520
        %893 = vmatpush1.msra.mxu0 %v519
        %894 = vmatprep.subr.mxu0 %v522
        %895 = vmatpush1.msra.mxu0 %v521
        %896 = vmatprep.subr.mxu0 %v524
        %897 = vmatpush1.msra.mxu0 %v523
        %898 = vmatprep.subr.mxu0 %v526
        %899 = vmatpush1.msra.mxu0 %v525
        %900 = vmatprep.subr.mxu0 %v528
        %901 = vmatpush1.msra.mxu0 %v527
        %902 = vmatprep.subr.mxu0 %v530
        %903 = vmatpush1.msra.mxu0 %v529
        %904 = vmatprep.subr.mxu0 %v532
        %905 = vmatpush1.msra.mxu0 %v531
        %906 = vmatprep.subr.mxu0 %v534
        %907 = vmatpush1.msra.mxu0 %v533
        %908 = vmatprep.subr.mxu0 %v536
        %909 = vmatpush1.msra.mxu0 %v535
        %910 = vmatprep.subr.mxu0 %v538
        %911 = vmatpush1.msra.mxu0 %v537
        %912 = vmatprep.subr.mxu0 %v540
        %913 = vmatpush1.msra.mxu0 %v539
        %914 = vmatprep.subr.mxu0 0.0
        %915 = vmatpush1.msra.mxu0 0.0
        %916 = vmatprep.subr.mxu0 0.0
        %917 = vmatpush1.msra.mxu0 0.0
        %918 = vmatprep.subr.mxu0 0.0
        %919 = vmatpush1.msra.mxu0 0.0
        %920 = vmatprep.subr.mxu0 0.0
        %921 = vmatpush1.msra.mxu0 0.0
        %922 = vmatprep.subr.mxu0 0.0
        %923 = vmatpush1.msra.mxu0 0.0
        %924 = vmatprep.subr.mxu0 0.0
        %925 = vmatpush1.msra.mxu0 0.0
        %926 = vmatprep.subr.mxu0 0.0
        %927 = vmatpush1.msra.mxu0 0.0
        %928 = vmatprep.subr.mxu0 0.0
        %929 = vmatpush1.msra.mxu0 0.0
        %930 = vmatprep.subr.mxu0 0.0
        %931 = vmatpush1.msra.mxu0 0.0
        %932 = vmatprep.subr.mxu0 0.0
        %933 = vmatpush1.msra.mxu0 0.0
        %934 = vmatprep.subr.mxu0 0.0
        %935 = vmatpush1.msra.mxu0 0.0
        %936 = vmatprep.subr.mxu0 0.0
        %937 = vmatpush1.msra.mxu0 0.0
        %938 = vmatprep.subr.mxu0 0.0
        %939 = vmatpush1.msra.mxu0 0.0
        %940 = vmatprep.subr.mxu0 0.0
        %941 = vmatpush1.msra.mxu0 0.0
        %942 = vmatprep.subr.mxu0 0.0
        %943 = vmatpush1.msra.mxu0 0.0
        %944 = vmatprep.subr.mxu0 0.0
        %945 = vmatpush1.msra.mxu0 0.0
        %946 = vmatprep.subr.mxu0 0.0
        %947 = vmatpush1.msra.mxu0 0.0
        %948 = vmatprep.subr.mxu0 0.0
        %949 = vmatpush1.msra.mxu0 0.0
        %950 = vmatprep.subr.mxu0 0.0
        %951 = vmatpush1.msra.mxu0 0.0
        %952 = vmatprep.subr.mxu0 0.0
        %953 = vmatpush1.msra.mxu0 0.0
        %954 = vmatprep.mubr.f32.mxu0 0.0
        %955 = vmatmul.mubr.f32.gmra.mrb[0].mxu0 %v888
        %v956 = vpop.f32.mrb[0].mxu0
        %v957 = vadd.f32 %v879, %v956
        %v958 = vpop.f32.mrb[0].mxu0
        %v959 = vadd.f32 %v883, %v958
        %960 = vdwg.mxu0
        %v961 = vmax.f32 %v957, 0.0
        %v962 = vmax.f32 %v959, 0.0
        %v964 = vsel %vm849, %v962, 0
        %966 = vmatprep.subr.mxu0 0.0
        %967 = vmatpush1.msra.mxu0 %v541
        %968 = vmatprep.subr.mxu0 0.0
        %969 = vmatpush1.msra.mxu0 %v542
        %970 = vmatprep.subr.mxu0 0.0
        %971 = vmatpush1.msra.mxu0 %v543
        %972 = vmatprep.subr.mxu0 0.0
        %973 = vmatpush1.msra.mxu0 %v544
        %974 = vmatprep.subr.mxu0 0.0
        %975 = vmatpush1.msra.mxu0 %v545
        %976 = vmatprep.subr.mxu0 0.0
        %977 = vmatpush1.msra.mxu0 %v546
        %978 = vmatprep.subr.mxu0 0.0
        %979 = vmatpush1.msra.mxu0 %v547
        %980 = vmatprep.subr.mxu0 0.0
        %981 = vmatpush1.msra.mxu0 %v548
        %982 = vmatprep.subr.mxu0 0.0
        %983 = vmatpush1.msra.mxu0 %v549
        %984 = vmatprep.subr.mxu0 0.0
        %985 = vmatpush1.msra.mxu0 %v550
        %986 = vmatprep.subr.mxu0 0.0
        %987 = vmatpush1.msra.mxu0 %v551
        %988 = vmatprep.subr.mxu0 0.0
        %989 = vmatpush1.msra.mxu0 %v552
        %990 = vmatprep.subr.mxu0 0.0
        %991 = vmatpush1.msra.mxu0 %v553
        %992 = vmatprep.subr.mxu0 0.0
        %993 = vmatpush1.msra.mxu0 %v554
        %994 = vmatprep.subr.mxu0 0.0
        %995 = vmatpush1.msra.mxu0 %v555
        %996 = vmatprep.subr.mxu0 0.0
        %997 = vmatpush1.msra.mxu0 %v556
        %998 = vmatprep.subr.mxu0 0.0
        %999 = vmatpush1.msra.mxu0 %v557
        %1000 = vmatprep.subr.mxu0 0.0
        %1001 = vmatpush1.msra.mxu0 %v558
        %1002 = vmatprep.subr.mxu0 0.0
        %1003 = vmatpush1.msra.mxu0 %v559
        %1004 = vmatprep.subr.mxu0 0.0
        %1005 = vmatpush1.msra.mxu0 %v560
        %1006 = vmatprep.subr.mxu0 0.0
        %1007 = vmatpush1.msra.mxu0 %v561
        %1008 = vmatprep.subr.mxu0 0.0
        %1009 = vmatpush1.msra.mxu0 %v562
        %1010 = vmatprep.subr.mxu0 0.0
        %1011 = vmatpush1.msra.mxu0 %v563
        %1012 = vmatprep.subr.mxu0 0.0
        %1013 = vmatpush1.msra.mxu0 %v564
        %1014 = vmatprep.subr.mxu0 0.0
        %1015 = vmatpush1.msra.mxu0 0.0
        %1016 = vmatprep.subr.mxu0 0.0
        %1017 = vmatpush1.msra.mxu0 0.0
        %1018 = vmatprep.subr.mxu0 0.0
        %1019 = vmatpush1.msra.mxu0 0.0
        %1020 = vmatprep.subr.mxu0 0.0
        %1021 = vmatpush1.msra.mxu0 0.0
        %1022 = vmatprep.subr.mxu0 0.0
        %1023 = vmatpush1.msra.mxu0 0.0
        %1024 = vmatprep.subr.mxu0 0.0
        %1025 = vmatpush1.msra.mxu0 0.0
        %1026 = vmatprep.subr.mxu0 0.0
        %1027 = vmatpush1.msra.mxu0 0.0
        %1028 = vmatprep.subr.mxu0 0.0
        %1029 = vmatpush1.msra.mxu0 0.0
        %1030 = vmatprep.mubr.f32.mxu0 %v964
        %1031 = vmatmul.mubr.f32.gmra.mrb[0].mxu0 %v961
        %v1032 = vpop.f32.mrb[0].mxu0
        %v1033 = vadd.f32 0.0, %v1032
        %v1034 = vpop.f32.mrb[0].mxu0
        %1035 = vdwg.mxu0
        %v1036 = vmul.f32 %v685, %v1033
        %1038 = vrot.lane.b32.xlu0 %v1033, 112
        %v1039 = vpop.permute.xlu0 %1038
        %1041 = vrot.lane.b32.xlu0 %v1033, 80
        %v1042 = vpop.permute.xlu0 %1041
        %v1044 = vsel %vm839, %v1039, %v1042
        %v1045 = vmul.f32 %v687, %v1044
        %v1046 = vadd.f32 %v1036, %v1045
        %1047 = vrot.lane.b32.xlu0 %v1033, 96
        %v1048 = vpop.permute.xlu0 %1047
        %1050 = vrot.lane.b32.xlu0 %v1033, 64
        %v1051 = vpop.permute.xlu0 %1050
        %v1053 = vsel %vm849, %v1048, %v1051
        %v1054 = vmul.f32 %v756, %v1053
        %v1055 = vadd.f32 %v1046, %v1054
        %1056 = vrot.lane.b32.xlu0 %v1033, 48
        %v1057 = vpop.permute.xlu0 %1056
        %v1059 = vsel %vm856, %v1042, %v1057
        %v1060 = vmul.f32 %v758, %v1059
        %v1061 = vadd.f32 %v1055, %v1060
        %1062 = vrot.lane.b32.xlu0 %v1033, 32
        %v1063 = vpop.permute.xlu0 %1062
        %v1065 = vsel %vm863, %v1051, %v1063
        %v1066 = vmul.f32 %v827, %v1065
        %v1067 = vadd.f32 %v1061, %v1066
        %1068 = vrot.lane.b32.xlu0 %v1033, 16
        %v1069 = vpop.permute.xlu0 %1068
        %v1071 = vsel %vm870, %v1057, %v1069
        %v1072 = vmul.f32 %v829, %v1071
        %v1073 = vadd.f32 %v1067, %v1072
        %v1074 = vld [vmem:[%s6] sm:$0x1]
        %v1076 = vlaneseq
        %v1077 = vshrl.u32 %v1076, 7
        %v1078 = vsub.s32 0, %v1077
        %v1079 = vrot.slane %v1074, %v1078
        %v1081 = vadd.f32 %v1073, %v1079
        %v1082 = vld [vmem:[%s7] sm:$0xff]
        %v1083 = vld [vmem:[%s7 + $0x8] sm:$0xff]
        %v1084 = vld [vmem:[%s7 + $0x10] sm:$0xff]
        %v1085 = vld [vmem:[%s7 + $0x18] sm:$0xff]
        %v1086 = vld [vmem:[%s7 + $0x20] sm:$0xff]
        %v1087 = vld [vmem:[%s7 + $0x28] sm:$0xff]
        %v1088 = vld [vmem:[%s7 + $0x30] sm:$0xff]
        %v1089 = vld [vmem:[%s7 + $0x38] sm:$0xff]
        %v1090 = vld [vmem:[%s7 + $0x40] sm:$0xff]
        %v1091 = vld [vmem:[%s7 + $0x48] sm:$0xff]
        %v1092 = vld [vmem:[%s7 + $0x50] sm:$0xff]
        %v1093 = vld [vmem:[%s7 + $0x58] sm:$0xff]
        %v1094 = vld [vmem:[%s8] sm:$0x1]
        %v1096 = vlaneseq
        %v1097 = vshrl.u32 %v1096, 7
        %v1098 = vsub.s32 0, %v1097
        %v1099 = vrot.slane %v1094, %v1098
        %v1102 = vsel %vm886, %v1081, 0
        %1104 = vmatprep.subr.mxu0 0.0
        %1105 = vmatpush1.msra.mxu0 %v1082
        %1106 = vmatprep.subr.mxu0 0.0
        %1107 = vmatpush1.msra.mxu0 %v1083
        %1108 = vmatprep.subr.mxu0 0.0
        %1109 = vmatpush1.msra.mxu0 %v1084
        %1110 = vmatprep.subr.mxu0 0.0
        %1111 = vmatpush1.msra.mxu0 %v1085
        %1112 = vmatprep.subr.mxu0 0.0
        %1113 = vmatpush1.msra.mxu0 %v1086
        %1114 = vmatprep.subr.mxu0 0.0
        %1115 = vmatpush1.msra.mxu0 %v1087
        %1116 = vmatprep.subr.mxu0 0.0
        %1117 = vmatpush1.msra.mxu0 %v1088
        %1118 = vmatprep.subr.mxu0 0.0
        %1119 = vmatpush1.msra.mxu0 %v1089
        %1120 = vmatprep.subr.mxu0 0.0
        %1121 = vmatpush1.msra.mxu0 %v1090
        %1122 = vmatprep.subr.mxu0 0.0
        %1123 = vmatpush1.msra.mxu0 %v1091
        %1124 = vmatprep.subr.mxu0 0.0
        %1125 = vmatpush1.msra.mxu0 %v1092
        %1126 = vmatprep.subr.mxu0 0.0
        %1127 = vmatpush1.msra.mxu0 %v1093
        %1128 = vmatprep.subr.mxu0 0.0
        %1129 = vmatpush1.msra.mxu0 0.0
        %1130 = vmatprep.subr.mxu0 0.0
        %1131 = vmatpush1.msra.mxu0 0.0
        %1132 = vmatprep.subr.mxu0 0.0
        %1133 = vmatpush1.msra.mxu0 0.0
        %1134 = vmatprep.subr.mxu0 0.0
        %1135 = vmatpush1.msra.mxu0 0.0
        %1136 = vmatprep.subr.mxu0 0.0
        %1137 = vmatpush1.msra.mxu0 0.0
        %1138 = vmatprep.subr.mxu0 0.0
        %1139 = vmatpush1.msra.mxu0 0.0
        %1140 = vmatprep.subr.mxu0 0.0
        %1141 = vmatpush1.msra.mxu0 0.0
        %1142 = vmatprep.subr.mxu0 0.0
        %1143 = vmatpush1.msra.mxu0 0.0
        %1144 = vmatprep.subr.mxu0 0.0
        %1145 = vmatpush1.msra.mxu0 0.0
        %1146 = vmatprep.subr.mxu0 0.0
        %1147 = vmatpush1.msra.mxu0 0.0
        %1148 = vmatprep.subr.mxu0 0.0
        %1149 = vmatpush1.msra.mxu0 0.0
        %1150 = vmatprep.subr.mxu0 0.0
        %1151 = vmatpush1.msra.mxu0 0.0
        %1152 = vmatprep.subr.mxu0 0.0
        %1153 = vmatpush1.msra.mxu0 0.0
        %1154 = vmatprep.subr.mxu0 0.0
        %1155 = vmatpush1.msra.mxu0 0.0
        %1156 = vmatprep.subr.mxu0 0.0
        %1157 = vmatpush1.msra.mxu0 0.0
        %1158 = vmatprep.subr.mxu0 0.0
        %1159 = vmatpush1.msra.mxu0 0.0
        %1160 = vmatprep.subr.mxu0 0.0
        %1161 = vmatpush1.msra.mxu0 0.0
        %1162 = vmatprep.subr.mxu0 0.0
        %1163 = vmatpush1.msra.mxu0 0.0
        %1164 = vmatprep.subr.mxu0 0.0
        %1165 = vmatpush1.msra.mxu0 0.0
        %1166 = vmatprep.subr.mxu0 0.0
        %1167 = vmatpush1.msra.mxu0 0.0
        %1168 = vmatprep.mubr.f32.mxu0 0.0
        %1169 = vmatmul.mubr.f32.gmra.mrb[0].mxu0 %v1102
        %v1170 = vpop.f32.mrb[0].mxu0
        %v1171 = vadd.f32 %v1099, %v1170
        %v1172 = vpop.f32.mrb[0].mxu0
        %1173 = vdwg.mxu0
        %v1174 = vmax.f32 %v1171, 0.0
        %v1175 = vld [vmem:[%s9] sm:$0xff]
        %v1176 = vld [vmem:[%s9 + $0x8] sm:$0xff]
        %v1177 = vld [vmem:[%s9 + $0x10] sm:$0xff]
        %v1178 = vld [vmem:[%s9 + $0x18] sm:$0xff]
        %v1179 = vld [vmem:[%s9 + $0x20] sm:$0xff]
        %v1180 = vld [vmem:[%s9 + $0x28] sm:$0xff]
        %v1181 = vld [vmem:[%s9 + $0x30] sm:$0xff]
        %v1182 = vld [vmem:[%s9 + $0x38] sm:$0xff]
        %v1183 = vld [vmem:[%s10] sm:$0x1]
        %v1185 = vlaneseq
        %v1186 = vshrl.u32 %v1185, 7
        %v1187 = vsub.s32 0, %v1186
        %v1188 = vrot.slane %v1183, %v1187
        %v1191 = vsel %vm849, %v1174, 0
        %1193 = vmatprep.subr.mxu0 0.0
        %1194 = vmatpush1.msra.mxu0 %v1175
        %1195 = vmatprep.subr.mxu0 0.0
        %1196 = vmatpush1.msra.mxu0 %v1176
        %1197 = vmatprep.subr.mxu0 0.0
        %1198 = vmatpush1.msra.mxu0 %v1177
        %1199 = vmatprep.subr.mxu0 0.0
        %1200 = vmatpush1.msra.mxu0 %v1178
        %1201 = vmatprep.subr.mxu0 0.0
        %1202 = vmatpush1.msra.mxu0 %v1179
        %1203 = vmatprep.subr.mxu0 0.0
        %1204 = vmatpush1.msra.mxu0 %v1180
        %1205 = vmatprep.subr.mxu0 0.0
        %1206 = vmatpush1.msra.mxu0 %v1181
        %1207 = vmatprep.subr.mxu0 0.0
        %1208 = vmatpush1.msra.mxu0 %v1182
        %1209 = vmatprep.subr.mxu0 0.0
        %1210 = vmatpush1.msra.mxu0 0.0
        %1211 = vmatprep.subr.mxu0 0.0
        %1212 = vmatpush1.msra.mxu0 0.0
        %1213 = vmatprep.subr.mxu0 0.0
        %1214 = vmatpush1.msra.mxu0 0.0
        %1215 = vmatprep.subr.mxu0 0.0
        %1216 = vmatpush1.msra.mxu0 0.0
        %1217 = vmatprep.subr.mxu0 0.0
        %1218 = vmatpush1.msra.mxu0 0.0
        %1219 = vmatprep.subr.mxu0 0.0
        %1220 = vmatpush1.msra.mxu0 0.0
        %1221 = vmatprep.subr.mxu0 0.0
        %1222 = vmatpush1.msra.mxu0 0.0
        %1223 = vmatprep.subr.mxu0 0.0
        %1224 = vmatpush1.msra.mxu0 0.0
        %1225 = vmatprep.subr.mxu0 0.0
        %1226 = vmatpush1.msra.mxu0 0.0
        %1227 = vmatprep.subr.mxu0 0.0
        %1228 = vmatpush1.msra.mxu0 0.0
        %1229 = vmatprep.subr.mxu0 0.0
        %1230 = vmatpush1.msra.mxu0 0.0
        %1231 = vmatprep.subr.mxu0 0.0
        %1232 = vmatpush1.msra.mxu0 0.0
        %1233 = vmatprep.subr.mxu0 0.0
        %1234 = vmatpush1.msra.mxu0 0.0
        %1235 = vmatprep.subr.mxu0 0.0
        %1236 = vmatpush1.msra.mxu0 0.0
        %1237 = vmatprep.subr.mxu0 0.0
        %1238 = vmatpush1.msra.mxu0 0.0
        %1239 = vmatprep.subr.mxu0 0.0
        %1240 = vmatpush1.msra.mxu0 0.0
        %1241 = vmatprep.subr.mxu0 0.0
        %1242 = vmatpush1.msra.mxu0 0.0
        %1243 = vmatprep.subr.mxu0 0.0
        %1244 = vmatpush1.msra.mxu0 0.0
        %1245 = vmatprep.subr.mxu0 0.0
        %1246 = vmatpush1.msra.mxu0 0.0
        %1247 = vmatprep.subr.mxu0 0.0
        %1248 = vmatpush1.msra.mxu0 0.0
        %1249 = vmatprep.subr.mxu0 0.0
        %1250 = vmatpush1.msra.mxu0 0.0
        %1251 = vmatprep.subr.mxu0 0.0
        %1252 = vmatpush1.msra.mxu0 0.0
        %1253 = vmatprep.subr.mxu0 0.0
        %1254 = vmatpush1.msra.mxu0 0.0
        %1255 = vmatprep.subr.mxu0 0.0
        %1256 = vmatpush1.msra.mxu0 0.0
        %1257 = vmatprep.mubr.f32.mxu0 0.0
        %1258 = vmatmul.mubr.f32.gmra.mrb[0].mxu0 %v1191
        %v1259 = vpop.f32.mrb[0].mxu0
        %v1260 = vadd.f32 %v1188, %v1259
        %v1261 = vpop.f32.mrb[0].mxu0
        %1262 = vdwg.mxu0
        %v1263 = vmax.f32 %v1260, 0.0
        %v1264 = vld [vmem:[%s11] sm:$0xff]
        %v1265 = vld [vmem:[%s11 + $0x8] sm:$0xff]
        %v1266 = vld [vmem:[%s12] sm:$0x1]
        %v1268 = vlaneseq
        %v1269 = vshrl.u32 %v1268, 7
        %v1270 = vsub.s32 0, %v1269
        %v1271 = vrot.slane %v1266, %v1270
        %v1274 = vsel %vm870, %v1263, 0
        %1276 = vmatprep.subr.mxu0 0.0
        %1277 = vmatpush1.msra.mxu0 %v1264
        %1278 = vmatprep.subr.mxu0 0.0
        %1279 = vmatpush1.msra.mxu0 %v1265
        %1280 = vmatprep.subr.mxu0 0.0
        %1281 = vmatpush1.msra.mxu0 0.0
        %1282 = vmatprep.subr.mxu0 0.0
        %1283 = vmatpush1.msra.mxu0 0.0
        %1284 = vmatprep.subr.mxu0 0.0
        %1285 = vmatpush1.msra.mxu0 0.0
        %1286 = vmatprep.subr.mxu0 0.0
        %1287 = vmatpush1.msra.mxu0 0.0
        %1288 = vmatprep.subr.mxu0 0.0
        %1289 = vmatpush1.msra.mxu0 0.0
        %1290 = vmatprep.subr.mxu0 0.0
        %1291 = vmatpush1.msra.mxu0 0.0
        %1292 = vmatprep.subr.mxu0 0.0
        %1293 = vmatpush1.msra.mxu0 0.0
        %1294 = vmatprep.subr.mxu0 0.0
        %1295 = vmatpush1.msra.mxu0 0.0
        %1296 = vmatprep.subr.mxu0 0.0
        %1297 = vmatpush1.msra.mxu0 0.0
        %1298 = vmatprep.subr.mxu0 0.0
        %1299 = vmatpush1.msra.mxu0 0.0
        %1300 = vmatprep.subr.mxu0 0.0
        %1301 = vmatpush1.msra.mxu0 0.0
        %1302 = vmatprep.subr.mxu0 0.0
        %1303 = vmatpush1.msra.mxu0 0.0
        %1304 = vmatprep.subr.mxu0 0.0
        %1305 = vmatpush1.msra.mxu0 0.0
        %1306 = vmatprep.subr.mxu0 0.0
        %1307 = vmatpush1.msra.mxu0 0.0
        %1308 = vmatprep.subr.mxu0 0.0
        %1309 = vmatpush1.msra.mxu0 0.0
        %1310 = vmatprep.subr.mxu0 0.0
        %1311 = vmatpush1.msra.mxu0 0.0
        %1312 = vmatprep.subr.mxu0 0.0
        %1313 = vmatpush1.msra.mxu0 0.0
        %1314 = vmatprep.subr.mxu0 0.0
        %1315 = vmatpush1.msra.mxu0 0.0
        %1316 = vmatprep.subr.mxu0 0.0
        %1317 = vmatpush1.msra.mxu0 0.0
        %1318 = vmatprep.subr.mxu0 0.0
        %1319 = vmatpush1.msra.mxu0 0.0
        %1320 = vmatprep.subr.mxu0 0.0
        %1321 = vmatpush1.msra.mxu0 0.0
        %1322 = vmatprep.subr.mxu0 0.0
        %1323 = vmatpush1.msra.mxu0 0.0
        %1324 = vmatprep.subr.mxu0 0.0
        %1325 = vmatpush1.msra.mxu0 0.0
        %1326 = vmatprep.subr.mxu0 0.0
        %1327 = vmatpush1.msra.mxu0 0.0
        %1328 = vmatprep.subr.mxu0 0.0
        %1329 = vmatpush1.msra.mxu0 0.0
        %1330 = vmatprep.subr.mxu0 0.0
        %1331 = vmatpush1.msra.mxu0 0.0
        %1332 = vmatprep.subr.mxu0 0.0
        %1333 = vmatpush1.msra.mxu0 0.0
        %1334 = vmatprep.subr.mxu0 0.0
        %1335 = vmatpush1.msra.mxu0 0.0
        %1336 = vmatprep.subr.mxu0 0.0
        %1337 = vmatpush1.msra.mxu0 0.0
        %1338 = vmatprep.subr.mxu0 0.0
        %1339 = vmatpush1.msra.mxu0 0.0
        %1340 = vmatprep.mubr.f32.mxu0 0.0
        %1341 = vmatmul.mubr.f32.gmra.mrb[0].mxu0 %v1274
        %v1342 = vpop.f32.mrb[0].mxu0
        %v1343 = vadd.f32 %v1271, %v1342
        %v1344 = vpop.f32.mrb[0].mxu0
        %1345 = vdwg.mxu0
        %vm1346 = vcmask 15360
        %1347 = vst.msk [vmem:[%s514] sm:$0xff] %vm1346, %v1343
        %p1348 = scmp.lt.s32.totalorder %s29, 1
        %s1349 = scalar_select %p1348, %s29, 1
        %s1350 = smul.addr %s1349, 8
        %s1351 = scalar_lea.vmem %s13, %s1350
        // Predicated region
        $region89: #{tpu_custom_call.1} parent=71 // pred_check
          %p1352 = pneg %p330
        $region90: #{tpu_custom_call.1} parent=71 // pred_check_branch
          %1354 = sbr.rel (%p1352) target = $region92
        $region91: #{tpu_custom_call.1} parent=71 // pred_region
          _
        $region92: #{tpu_custom_call.1} parent=71 // pred_fallthru
          _
      $region72: #{tpu_custom_call.1} parent=5 // pred_fallthru
        _
      %p1355 = scmp.le.s32.totalorder 2, %s24
      // Predicated region
      $region93: #{tpu_custom_call.1} parent=5 // pred_check
        %p1356 = pneg %p1355
      $region94: #{tpu_custom_call.1} parent=5 // pred_check_branch
        %1358 = sbr.rel (%p1356) target = $region96
      $region95: #{tpu_custom_call.1} parent=5 // pred_region
        %s1359 = ssub.s32 %s24, 2
        // Predicated region
        $region97: #{tpu_custom_call.1} parent=95 // pred_check
          %p1360 = pneg %p336
        $region98: #{tpu_custom_call.1} parent=95 // pred_check_branch
          %1362 = sbr.rel (%p1360) target = $region100
        $region99: #{tpu_custom_call.1} parent=95 // pred_region
          %p1363 = scmp.lt.s32.totalorder %s30, 1
          %s1364 = scalar_select %p1363, %s30, 1
          %s1365 = smul.addr %s1364, 8
          %s1366 = scalar_lea.vmem %s13, %s1365
        $region100: #{tpu_custom_call.1} parent=95 // pred_fallthru
          _
      $region96: #{tpu_custom_call.1} parent=5 // pred_fallthru
        _
    $region6: #{tpu_custom_call.1} parent=1 // loop_footer
      %s28 = sadd.s32 1, %s24
    $region7: #{tpu_custom_call.1} parent=1 // loop_footer_branch
      %23 = sbr.rel target = $region3
    $region8: #{tpu_custom_call.1} parent=1 // loop_exit
      _
    %1367 = vsyncpa [#allocation3], 1
    %s1368 = scalar_lea.sflag [#allocation3], 1
    %1369 = vsyncpa %s1368, 1
    %1370 = vsyncpa [#allocation5], 1
    %1371 = vsyncpa [#allocation8], 1

</llo_original>
